<compile_context>
chip_gen: v6e
topology: v6e:2x2x1
jax: 0.10.0
libtpu: 0.0.40
codegen_flags: <defaults>
</compile_context>

<pallas_src>
import jax
import jax.numpy as jnp
from jax.experimental import pallas as pl
from jax.experimental.pallas import tpu as pltpu

H1, H2, H3, H4 = 512, 256, 128, 64


def _round_up(x, m):
    return ((x + m - 1) // m) * m


def deeperhead_kernel(x_ref, w1_ref, b1_ref, w2_ref, b2_ref, w3_ref, b3_ref,
                      w4_ref, b4_ref, w5_ref, b5_ref, o_ref):
    cdt = w1_ref.dtype  # compute dtype for the MXU (bf16 or f32)

    # Layer 1: Linear(input_dim, 512) + ReLU   (Dropout: identity in eval mode)
    h = jnp.dot(x_ref[...], w1_ref[...], preferred_element_type=jnp.float32)
    h = jnp.maximum(h + b1_ref[...], 0.0)

    # Layer 2: Linear(512, 256) + ReLU
    h = jnp.dot(h.astype(cdt), w2_ref[...], preferred_element_type=jnp.float32)
    h = jnp.maximum(h + b2_ref[...], 0.0)

    # Layer 3: Linear(256, 128) + ReLU
    h = jnp.dot(h.astype(cdt), w3_ref[...], preferred_element_type=jnp.float32)
    h = jnp.maximum(h + b3_ref[...], 0.0)

    # Layer 4: Linear(128, 64) + ReLU
    h = jnp.dot(h.astype(cdt), w4_ref[...], preferred_element_type=jnp.float32)
    h = jnp.maximum(h + b4_ref[...], 0.0)

    # Layer 5: Linear(64, 1), folded into a lane-dense epilogue:
    #   (1, 64) contracted against (tile_b, 64) on their last dims -> (1, tile_b)
    out_row = jax.lax.dot_general(
        w5_ref[...], h.astype(cdt),
        dimension_numbers=(((1,), (1,)), ((), ())),
        preferred_element_type=jnp.float32)
    o_ref[...] = (out_row + b5_ref[0]).astype(o_ref.dtype)


def deeperhead_forward(x, params, *, tile_b=512, compute_dtype=jnp.bfloat16,
                       vmem_limit_bytes=48 * 1024 * 1024):
    """x: (B, input_dim) float32.  Returns (B,) float32."""
    w1, b1, w2, b2, w3, b3, w4, b4, w5, b5 = params
    B, D = x.shape

    # Lane-dense batch tiles: multiples of 128 rows, but never bigger than the
    # (rounded-up) batch.  Zero-pad ragged batches; padded rows are discarded.
    tile_b = _round_up(max(1, min(tile_b, B)), 128)
    Bp = _round_up(B, tile_b)
    if Bp != B:
        x = jnp.pad(x, ((0, Bp - B), (0, 0)))
    n_tiles = Bp // tile_b

    cdt = compute_dtype
    x_c = x.astype(cdt)
    w1_c = w1.astype(cdt)
    w2_c = w2.astype(cdt)
    w3_c = w3.astype(cdt)
    w4_c = w4.astype(cdt)
    w5_row = w5.reshape(1, H4).astype(cdt)          # (1, 64) row for the epilogue
    b5_s = b5.reshape(-1).astype(jnp.float32)       # (1,) scalar, lives in SMEM

    out = pl.pallas_call(
        deeperhead_kernel,
        out_shape=jax.ShapeDtypeStruct((n_tiles, tile_b), jnp.float32),
        grid=(n_tiles,),
        in_specs=[
            pl.BlockSpec((tile_b, D), lambda i: (i, 0)),        # x tile
            pl.BlockSpec((D, H1), lambda i: (0, 0)),            # W1 (resident)
            pl.BlockSpec((1, H1), lambda i: (0, 0)),            # b1
            pl.BlockSpec((H1, H2), lambda i: (0, 0)),           # W2
            pl.BlockSpec((1, H2), lambda i: (0, 0)),            # b2
            pl.BlockSpec((H2, H3), lambda i: (0, 0)),           # W3
            pl.BlockSpec((1, H3), lambda i: (0, 0)),            # b3
            pl.BlockSpec((H3, H4), lambda i: (0, 0)),           # W4
            pl.BlockSpec((1, H4), lambda i: (0, 0)),            # b4
            pl.BlockSpec((1, H4), lambda i: (0, 0)),            # W5 as a row
            pl.BlockSpec(memory_space=pltpu.MemorySpace.SMEM),  # b5 scalar
        ],
        out_specs=pl.BlockSpec((1, tile_b), lambda i: (i, 0)),  # lane-dense row
        compiler_params=pltpu.CompilerParams(
            dimension_semantics=("parallel",),
            vmem_limit_bytes=vmem_limit_bytes),
    )(x_c, w1_c, b1, w2_c, b2, w3_c, b3, w4_c, b4, w5_row, b5_s)

    return out.reshape(-1)[:B]  # undo padding; matches .squeeze(-1)


def init_params(key, input_dim):
    """Deterministic init matching the nn.Linear shapes (Kaiming-uniform-ish)."""
    ks = jax.random.split(key, 10)

    def lin(kw, kb, fan_in, fan_out):
        bound = 1.0 / jnp.sqrt(fan_in)
        w = jax.random.uniform(kw, (fan_in, fan_out), jnp.float32,
                               minval=-bound, maxval=bound)
        b = jax.random.uniform(kb, (1, fan_out), jnp.float32,
                               minval=-bound, maxval=bound)
        return w, b

    w1, b1 = lin(ks[0], ks[1], input_dim, H1)
    w2, b2 = lin(ks[2], ks[3], H1, H2)
    w3, b3 = lin(ks[4], ks[5], H2, H3)
    w4, b4 = lin(ks[6], ks[7], H3, H4)
    w5, b5 = lin(ks[8], ks[9], H4, 1)
    return (w1, b1, w2, b2, w3, b3, w4, b4, w5, b5)


def deeperhead_reference(x, params):
    w1, b1, w2, b2, w3, b3, w4, b4, w5, b5 = params
    h = jnp.maximum(x @ w1 + b1, 0.0)
    h = jnp.maximum(h @ w2 + b2, 0.0)
    h = jnp.maximum(h @ w3 + b3, 0.0)
    h = jnp.maximum(h @ w4 + b4, 0.0)
    return (h @ w5 + b5)[:, 0]


if __name__ == "__main__":
    key = jax.random.PRNGKey(0)
    k_x, k_p = jax.random.split(key)

    batch = 16          # ragged vs. the 128-row tile -> exercises padding path
    input_dim = 32      # e.g. pooled ESM feature dim (kept small for the demo)

    x = jax.random.normal(k_x, (batch, input_dim), dtype=jnp.float32)
    params = init_params(k_p, input_dim)

    y_ref = deeperhead_reference(x, params)

    # f32 compute path: tight correctness check.
    y_f32 = jax.block_until_ready(
        deeperhead_forward(x, params, compute_dtype=jnp.float32))
    assert y_f32.shape == (batch,)
    assert jnp.allclose(y_f32, y_ref, atol=1e-3, rtol=1e-3)

    # bf16 compute path (default, MXU-friendly on v6e/v7x): looser tolerance.
    y_bf16 = jax.block_until_ready(deeperhead_forward(x, params))
    assert y_bf16.shape == (batch,)
    assert jnp.allclose(y_bf16, y_ref, atol=5e-2, rtol=5e-2)

    print("KERNEL_OK")
</pallas_src>

<mosaic_0001>
module attributes {stable_mosaic.version = 11 : i64} {
  func.func @deeperhead_kernel(%arg0: i32, %arg1: memref<128x32xf32, #tpu.memory_space<vmem>>, %arg2: memref<32x512xf32, #tpu.memory_space<vmem>>, %arg3: memref<1x512xf32, #tpu.memory_space<vmem>>, %arg4: memref<512x256xf32, #tpu.memory_space<vmem>>, %arg5: memref<1x256xf32, #tpu.memory_space<vmem>>, %arg6: memref<256x128xf32, #tpu.memory_space<vmem>>, %arg7: memref<1x128xf32, #tpu.memory_space<vmem>>, %arg8: memref<128x64xf32, #tpu.memory_space<vmem>>, %arg9: memref<1x64xf32, #tpu.memory_space<vmem>>, %arg10: memref<1x64xf32, #tpu.memory_space<vmem>>, %arg11: memref<1xf32, #tpu.memory_space<smem>>, %arg12: memref<1x128xf32, #tpu.memory_space<vmem>>) attributes {dimension_semantics = [#tpu.dimension_semantics<parallel>], iteration_bounds = array<i64: 1>, scalar_prefetch = 0 : i64, scratch_operands = 0 : i64, tpu.core_type = #tpu.core_type<tc>, window_params = [{transform_indices = @transform_0, window_bounds = array<i64: 128, 32>}, {pipeline_mode = #tpu.pipeline_mode<synchronous>, transform_indices = @transform_1, window_bounds = array<i64: 32, 512>}, {pipeline_mode = #tpu.pipeline_mode<synchronous>, transform_indices = @transform_2, window_bounds = array<i64: 1, 512>}, {pipeline_mode = #tpu.pipeline_mode<synchronous>, transform_indices = @transform_3, window_bounds = array<i64: 512, 256>}, {pipeline_mode = #tpu.pipeline_mode<synchronous>, transform_indices = @transform_4, window_bounds = array<i64: 1, 256>}, {pipeline_mode = #tpu.pipeline_mode<synchronous>, transform_indices = @transform_5, window_bounds = array<i64: 256, 128>}, {pipeline_mode = #tpu.pipeline_mode<synchronous>, transform_indices = @transform_6, window_bounds = array<i64: 1, 128>}, {pipeline_mode = #tpu.pipeline_mode<synchronous>, transform_indices = @transform_7, window_bounds = array<i64: 128, 64>}, {pipeline_mode = #tpu.pipeline_mode<synchronous>, transform_indices = @transform_8, window_bounds = array<i64: 1, 64>}, {pipeline_mode = #tpu.pipeline_mode<synchronous>, transform_indices = @transform_9, window_bounds = array<i64: 1, 64>}, {transform_indices = @transform_10, window_bounds = array<i64: 1>}, {transform_indices = @transform_11, window_bounds = array<i64: 1, 128>}]} {
    %c0 = arith.constant 0 : index
    %c0_0 = arith.constant 0 : index
    %0 = vector.load %arg1[%c0, %c0_0] : memref<128x32xf32, #tpu.memory_space<vmem>>, vector<128x32xf32>
    %c0_1 = arith.constant 0 : index
    %c0_2 = arith.constant 0 : index
    %1 = vector.load %arg2[%c0_1, %c0_2] : memref<32x512xf32, #tpu.memory_space<vmem>>, vector<32x512xf32>
    %cst = arith.constant dense<0.000000e+00> : vector<128x512xf32>
    %2 = tpu.matmul %0, %1, %cst {dimension_numbers = #tpu.dot_dimension_numbers<[1], [0], [0], [1], [0, 0, 1, 1], [], []>} : vector<128x32xf32>, vector<32x512xf32>, vector<128x512xf32> -> vector<128x512xf32>
    %c0_3 = arith.constant 0 : index
    %c0_4 = arith.constant 0 : index
    %3 = vector.load %arg3[%c0_3, %c0_4] : memref<1x512xf32, #tpu.memory_space<vmem>>, vector<1x512xf32>
    %4 = vector.broadcast %3 : vector<1x512xf32> to vector<128x512xf32>
    %5 = arith.addf %2, %4 : vector<128x512xf32>
    %cst_5 = arith.constant 0.000000e+00 : f32
    %6 = vector.broadcast %cst_5 : f32 to vector<128x512xf32>
    %7 = arith.maximumf %5, %6 : vector<128x512xf32>
    %c0_6 = arith.constant 0 : index
    %c0_7 = arith.constant 0 : index
    %8 = vector.load %arg4[%c0_6, %c0_7] : memref<512x256xf32, #tpu.memory_space<vmem>>, vector<512x256xf32>
    %cst_8 = arith.constant dense<0.000000e+00> : vector<128x256xf32>
    %9 = tpu.matmul %7, %8, %cst_8 {dimension_numbers = #tpu.dot_dimension_numbers<[1], [0], [0], [1], [0, 0, 1, 1], [], []>} : vector<128x512xf32>, vector<512x256xf32>, vector<128x256xf32> -> vector<128x256xf32>
    %c0_9 = arith.constant 0 : index
    %c0_10 = arith.constant 0 : index
    %10 = vector.load %arg5[%c0_9, %c0_10] : memref<1x256xf32, #tpu.memory_space<vmem>>, vector<1x256xf32>
    %11 = vector.broadcast %10 : vector<1x256xf32> to vector<128x256xf32>
    %12 = arith.addf %9, %11 : vector<128x256xf32>
    %cst_11 = arith.constant 0.000000e+00 : f32
    %13 = vector.broadcast %cst_11 : f32 to vector<128x256xf32>
    %14 = arith.maximumf %12, %13 : vector<128x256xf32>
    %c0_12 = arith.constant 0 : index
    %c0_13 = arith.constant 0 : index
    %15 = vector.load %arg6[%c0_12, %c0_13] : memref<256x128xf32, #tpu.memory_space<vmem>>, vector<256x128xf32>
    %cst_14 = arith.constant dense<0.000000e+00> : vector<128x128xf32>
    %16 = tpu.matmul %14, %15, %cst_14 {dimension_numbers = #tpu.dot_dimension_numbers<[1], [0], [0], [1], [0, 0, 1, 1], [], []>} : vector<128x256xf32>, vector<256x128xf32>, vector<128x128xf32> -> vector<128x128xf32>
    %c0_15 = arith.constant 0 : index
    %c0_16 = arith.constant 0 : index
    %17 = vector.load %arg7[%c0_15, %c0_16] : memref<1x128xf32, #tpu.memory_space<vmem>>, vector<1x128xf32>
    %18 = vector.broadcast %17 : vector<1x128xf32> to vector<128x128xf32>
    %19 = arith.addf %16, %18 : vector<128x128xf32>
    %cst_17 = arith.constant 0.000000e+00 : f32
    %20 = vector.broadcast %cst_17 : f32 to vector<128x128xf32>
    %21 = arith.maximumf %19, %20 : vector<128x128xf32>
    %c0_18 = arith.constant 0 : index
    %c0_19 = arith.constant 0 : index
    %22 = vector.load %arg8[%c0_18, %c0_19] : memref<128x64xf32, #tpu.memory_space<vmem>>, vector<128x64xf32>
    %cst_20 = arith.constant dense<0.000000e+00> : vector<128x64xf32>
    %23 = tpu.matmul %21, %22, %cst_20 {dimension_numbers = #tpu.dot_dimension_numbers<[1], [0], [0], [1], [0, 0, 1, 1], [], []>} : vector<128x128xf32>, vector<128x64xf32>, vector<128x64xf32> -> vector<128x64xf32>
    %c0_21 = arith.constant 0 : index
    %c0_22 = arith.constant 0 : index
    %24 = vector.load %arg9[%c0_21, %c0_22] : memref<1x64xf32, #tpu.memory_space<vmem>>, vector<1x64xf32>
    %25 = vector.broadcast %24 : vector<1x64xf32> to vector<128x64xf32>
    %26 = arith.addf %23, %25 : vector<128x64xf32>
    %cst_23 = arith.constant 0.000000e+00 : f32
    %27 = vector.broadcast %cst_23 : f32 to vector<128x64xf32>
    %28 = arith.maximumf %26, %27 : vector<128x64xf32>
    %c0_24 = arith.constant 0 : index
    %c0_25 = arith.constant 0 : index
    %29 = vector.load %arg10[%c0_24, %c0_25] : memref<1x64xf32, #tpu.memory_space<vmem>>, vector<1x64xf32>
    %cst_26 = arith.constant dense<0.000000e+00> : vector<1x128xf32>
    %30 = tpu.matmul %29, %28, %cst_26 {dimension_numbers = #tpu.dot_dimension_numbers<[1], [1], [0], [0], [0, 0, 1, 0], [], []>} : vector<1x64xf32>, vector<128x64xf32>, vector<1x128xf32> -> vector<1x128xf32>
    %c0_27 = arith.constant 0 : index
    %31 = memref.load %arg11[%c0_27] : memref<1xf32, #tpu.memory_space<smem>>
    %32 = vector.broadcast %31 : f32 to vector<1x128xf32>
    %33 = arith.addf %30, %32 : vector<1x128xf32>
    %c0_28 = arith.constant 0 : index
    %c0_29 = arith.constant 0 : index
    %34 = vector.load %arg12[%c0_28, %c0_29] : memref<1x128xf32, #tpu.memory_space<vmem>>, vector<1x128xf32>
    tpu.vector_store %arg12[%c0_28, %c0_29], %33 {strides = array<i32>} : memref<1x128xf32, #tpu.memory_space<vmem>>, vector<1x128xf32>,
    return
  }
  func.func @transform_0(%arg0: i32) -> (i32, i32) {
    %c0_i32 = arith.constant 0 : i32
    %c0_i32_0 = arith.constant 0 : i32
    return %arg0, %c0_i32 : i32, i32
  }
  func.func @transform_1(%arg0: i32) -> (i32, i32) {
    %c0_i32 = arith.constant 0 : i32
    %c0_i32_0 = arith.constant 0 : i32
    %c0_i32_1 = arith.constant 0 : i32
    return %c0_i32, %c0_i32_0 : i32, i32
  }
  func.func @transform_2(%arg0: i32) -> (i32, i32) {
    %c0_i32 = arith.constant 0 : i32
    %c0_i32_0 = arith.constant 0 : i32
    %c0_i32_1 = arith.constant 0 : i32
    return %c0_i32, %c0_i32_0 : i32, i32
  }
  func.func @transform_3(%arg0: i32) -> (i32, i32) {
    %c0_i32 = arith.constant 0 : i32
    %c0_i32_0 = arith.constant 0 : i32
    %c0_i32_1 = arith.constant 0 : i32
    return %c0_i32, %c0_i32_0 : i32, i32
  }
  func.func @transform_4(%arg0: i32) -> (i32, i32) {
    %c0_i32 = arith.constant 0 : i32
    %c0_i32_0 = arith.constant 0 : i32
    %c0_i32_1 = arith.constant 0 : i32
    return %c0_i32, %c0_i32_0 : i32, i32
  }
  func.func @transform_5(%arg0: i32) -> (i32, i32) {
    %c0_i32 = arith.constant 0 : i32
    %c0_i32_0 = arith.constant 0 : i32
    %c0_i32_1 = arith.constant 0 : i32
    return %c0_i32, %c0_i32_0 : i32, i32
  }
  func.func @transform_6(%arg0: i32) -> (i32, i32) {
    %c0_i32 = arith.constant 0 : i32
    %c0_i32_0 = arith.constant 0 : i32
    %c0_i32_1 = arith.constant 0 : i32
    return %c0_i32, %c0_i32_0 : i32, i32
  }
  func.func @transform_7(%arg0: i32) -> (i32, i32) {
    %c0_i32 = arith.constant 0 : i32
    %c0_i32_0 = arith.constant 0 : i32
    %c0_i32_1 = arith.constant 0 : i32
    return %c0_i32, %c0_i32_0 : i32, i32
  }
  func.func @transform_8(%arg0: i32) -> (i32, i32) {
    %c0_i32 = arith.constant 0 : i32
    %c0_i32_0 = arith.constant 0 : i32
    %c0_i32_1 = arith.constant 0 : i32
    return %c0_i32, %c0_i32_0 : i32, i32
  }
  func.func @transform_9(%arg0: i32) -> (i32, i32) {
    %c0_i32 = arith.constant 0 : i32
    %c0_i32_0 = arith.constant 0 : i32
    %c0_i32_1 = arith.constant 0 : i32
    return %c0_i32, %c0_i32_0 : i32, i32
  }
  func.func @transform_10(%arg0: i32) -> i32 {
    %c0_i32 = arith.constant 0 : i32
    %c0_i32_0 = arith.constant 0 : i32
    return %c0_i32 : i32
  }
  func.func @transform_11(%arg0: i32) -> (i32, i32) {
    %c0_i32 = arith.constant 0 : i32
    %c0_i32_0 = arith.constant 0 : i32
    return %arg0, %c0_i32 : i32, i32
  }
}

</mosaic_0001>

<llo_original>
// kernel: tpu_custom_call.1
$region0: #{tpu_custom_call.1}
  #allocation0 [shape = 'u32[]', space=smem, size = 0x4, offset = 0x4, fixed_abs, tag = 'smem constant byte address 0x4 - core index']
  #allocation1 [shape = 'u32[144,128]{1,0:T(1,128)}', space=vmem, size = 0x12000, scoped, tag = 'internal scratch']
  #allocation2 [shape = 'f32[1]{0:T(128)S(6)}', space=smem, size = 0x200, scoped, tag = 'scoped memory for tpu_custom_call.1']
  %s0 = inlined_call_operand.vmem [shape: f32[128,32], index: 0, kind: input, shape index: {}]
  %s1 = inlined_call_operand.hbm [shape: f32[32,512], index: 1, kind: input, shape index: {}]
  %s2 = inlined_call_operand.vmem [shape: f32[1,512], index: 2, kind: input, shape index: {}]
  %s3 = inlined_call_operand.hbm [shape: f32[512,256], index: 3, kind: input, shape index: {}]
  %s4 = inlined_call_operand.vmem [shape: f32[1,256], index: 4, kind: input, shape index: {}]
  %s5 = inlined_call_operand.vmem [shape: f32[256,128], index: 5, kind: input, shape index: {}]
  %s6 = inlined_call_operand.vmem [shape: f32[1,128], index: 6, kind: input, shape index: {}]
  %s7 = inlined_call_operand.vmem [shape: f32[128,64], index: 7, kind: input, shape index: {}]
  %s8 = inlined_call_operand.vmem [shape: f32[1,64], index: 8, kind: input, shape index: {}]
  %s9 = inlined_call_operand.vmem [shape: f32[1,64], index: 9, kind: input, shape index: {}]
  %s10 = inlined_call_operand.<no memory space> [shape: f32[1], index: 10, kind: input, shape index: {}]
  %s11 = inlined_call_operand.hbm [shape: f32[1,128], index: 11, kind: output, shape index: {}]
  %s12 = sld [smem:[#allocation0]]
  $region62: #{tpu_custom_call.1} parent=0
    _
  %s14 = ssub.s32 1, %s12
  %s15 = scalar_select 0, %s14, %s12
  %16 = sst [smem:[#allocation2]] %s10
  $region1: #{tpu_custom_call.1} parent=0
    #allocation3 [shape = 'u8[65536]{0}', space=vmem, size = 0x10000, scoped, tag = 'input window, operand 1, single buffered']
    #allocation4 [shape = 's32[1]{0}', space=sflag, size = 0x4, scoped, tag = 'scoped memory for tpu_custom_call.1']
    #allocation5 [shape = 's32[1]{0}', space=sflag, size = 0x4, scoped, tag = 'scoped memory for tpu_custom_call.1']
    #allocation6 [shape = 'u8[524288]{0}', space=vmem, size = 0x80000, scoped, tag = 'input window, operand 3, single buffered']
    #allocation7 [shape = 's32[1]{0}', space=sflag, size = 0x4, scoped, tag = 'scoped memory for tpu_custom_call.1']
    #allocation8 [shape = 'u8[512]{0}', space=vmem, size = 0x400, scoped, tag = 'output window, operand 0, single buffered']
    %17 = vsyncpa [#allocation4], 0
    %18 = vsyncpa [#allocation7], 0
    %19 = vsyncpa [#allocation5], 0
    // Predicated region
    $region2: #{tpu_custom_call.1} parent=1 // pred_check
      _
    $region3: #{tpu_custom_call.1} parent=1 // pred_check_branch
      %21 = sbr.rel (0) target = $region5
    $region4: #{tpu_custom_call.1} parent=1 // pred_region
      _
    $region5: #{tpu_custom_call.1} parent=1 // pred_fallthru
      _
    // Predicated region
    $region6: #{tpu_custom_call.1} parent=1 // pred_check
      _
    $region7: #{tpu_custom_call.1} parent=1 // pred_check_branch
      %23 = sbr.rel (0) target = $region9
    $region8: #{tpu_custom_call.1} parent=1 // pred_region
      %s25 = ssub.s32 2048, 2048
      %26 = vsyncadd [#allocation4], %s25
      %s27 = sshll.u32 [#allocation3], 4
      %s28 = int_to_ptr.vmem [resolvable:$true] %s27
      %33 = dma.hbm_to_vmem [thread:$0]  %s1, 2048, %s28, [#allocation4], 512, 512, 32
    $region9: #{tpu_custom_call.1} parent=1 // pred_fallthru
      _
    // Predicated region
    $region10: #{tpu_custom_call.1} parent=1 // pred_check
      _
    $region11: #{tpu_custom_call.1} parent=1 // pred_check_branch
      %35 = sbr.rel (0) target = $region13
    $region12: #{tpu_custom_call.1} parent=1 // pred_region
      _
    $region13: #{tpu_custom_call.1} parent=1 // pred_fallthru
      _
    // Predicated region
    $region14: #{tpu_custom_call.1} parent=1 // pred_check
      _
    $region15: #{tpu_custom_call.1} parent=1 // pred_check_branch
      %37 = sbr.rel (0) target = $region17
    $region16: #{tpu_custom_call.1} parent=1 // pred_region
      %s39 = ssub.s32 16384, 16384
      %40 = vsyncadd [#allocation7], %s39
      %s41 = sshll.u32 [#allocation6], 4
      %s42 = int_to_ptr.vmem [resolvable:$true] %s41
      %47 = dma.hbm_to_vmem [thread:$0]  %s3, 16384, %s42, [#allocation7], 256, 256, 16
    $region17: #{tpu_custom_call.1} parent=1 // pred_fallthru
      _
    // Predicated region
    $region18: #{tpu_custom_call.1} parent=1 // pred_check
      _
    $region19: #{tpu_custom_call.1} parent=1 // pred_check_branch
      %49 = sbr.rel (0) target = $region21
    $region20: #{tpu_custom_call.1} parent=1 // pred_region
      _
    $region21: #{tpu_custom_call.1} parent=1 // pred_fallthru
      _
    // Predicated region
    $region22: #{tpu_custom_call.1} parent=1 // pred_check
      _
    $region23: #{tpu_custom_call.1} parent=1 // pred_check_branch
      %51 = sbr.rel (0) target = $region25
    $region24: #{tpu_custom_call.1} parent=1 // pred_region
      _
    $region25: #{tpu_custom_call.1} parent=1 // pred_fallthru
      _
    // Predicated region
    $region26: #{tpu_custom_call.1} parent=1 // pred_check
      _
    $region27: #{tpu_custom_call.1} parent=1 // pred_check_branch
      %53 = sbr.rel (0) target = $region29
    $region28: #{tpu_custom_call.1} parent=1 // pred_region
      _
    $region29: #{tpu_custom_call.1} parent=1 // pred_fallthru
      _
    // Predicated region
    $region30: #{tpu_custom_call.1} parent=1 // pred_check
      _
    $region31: #{tpu_custom_call.1} parent=1 // pred_check_branch
      %55 = sbr.rel (0) target = $region33
    $region32: #{tpu_custom_call.1} parent=1 // pred_region
      _
    $region33: #{tpu_custom_call.1} parent=1 // pred_fallthru
      _
    // Predicated region
    $region34: #{tpu_custom_call.1} parent=1 // pred_check
      _
    $region35: #{tpu_custom_call.1} parent=1 // pred_check_branch
      %57 = sbr.rel (0) target = $region37
    $region36: #{tpu_custom_call.1} parent=1 // pred_region
      _
    $region37: #{tpu_custom_call.1} parent=1 // pred_fallthru
      _
    // Predicated region
    $region38: #{tpu_custom_call.1} parent=1 // pred_check
      _
    $region39: #{tpu_custom_call.1} parent=1 // pred_check_branch
      %59 = sbr.rel (0) target = $region41
    $region40: #{tpu_custom_call.1} parent=1 // pred_region
      _
    $region41: #{tpu_custom_call.1} parent=1 // pred_fallthru
      _
    // Predicated region
    $region42: #{tpu_custom_call.1} parent=1 // pred_check
      _
    $region43: #{tpu_custom_call.1} parent=1 // pred_check_branch
      %61 = sbr.rel (0) target = $region45
    $region44: #{tpu_custom_call.1} parent=1 // pred_region
      _
    $region45: #{tpu_custom_call.1} parent=1 // pred_fallthru
      _
    // Predicated region
    $region46: #{tpu_custom_call.1} parent=1 // pred_check
      _
    $region47: #{tpu_custom_call.1} parent=1 // pred_check_branch
      %63 = sbr.rel (0) target = $region49
    $region48: #{tpu_custom_call.1} parent=1 // pred_region
      %64 = dma.done [#allocation4], 2048
    $region49: #{tpu_custom_call.1} parent=1 // pred_fallthru
      _
    // Predicated region
    $region50: #{tpu_custom_call.1} parent=1 // pred_check
      _
    $region51: #{tpu_custom_call.1} parent=1 // pred_check_branch
      %66 = sbr.rel (0) target = $region53
    $region52: #{tpu_custom_call.1} parent=1 // pred_region
      %67 = dma.done [#allocation7], 16384
    $region53: #{tpu_custom_call.1} parent=1 // pred_fallthru
      _
    %v68 = vld [vmem:[%s0] sm:$0xff]
    %v69 = vld [vmem:[%s0 + $0x8] sm:$0xff]
    %v70 = vld [vmem:[%s0 + $0x10] sm:$0xff]
    %v71 = vld [vmem:[%s0 + $0x18] sm:$0xff]
    %v72 = vld [vmem:[%s0 + $0x20] sm:$0xff]
    %v73 = vld [vmem:[%s0 + $0x28] sm:$0xff]
    %v74 = vld [vmem:[%s0 + $0x30] sm:$0xff]
    %v75 = vld [vmem:[%s0 + $0x38] sm:$0xff]
    %v76 = vld [vmem:[%s0 + $0x40] sm:$0xff]
    %v77 = vld [vmem:[%s0 + $0x48] sm:$0xff]
    %v78 = vld [vmem:[%s0 + $0x50] sm:$0xff]
    %v79 = vld [vmem:[%s0 + $0x58] sm:$0xff]
    %v80 = vld [vmem:[%s0 + $0x60] sm:$0xff]
    %v81 = vld [vmem:[%s0 + $0x68] sm:$0xff]
    %v82 = vld [vmem:[%s0 + $0x70] sm:$0xff]
    %v83 = vld [vmem:[%s0 + $0x78] sm:$0xff]
    %v84 = vld [vmem:[#allocation3] sm:$0xff]
    %v85 = vld [vmem:[#allocation3 + $0x8] sm:$0xff]
    %v86 = vld [vmem:[#allocation3 + $0x10] sm:$0xff]
    %v87 = vld [vmem:[#allocation3 + $0x18] sm:$0xff]
    %v88 = vld [vmem:[#allocation3 + $0x20] sm:$0xff]
    %v89 = vld [vmem:[#allocation3 + $0x28] sm:$0xff]
    %v90 = vld [vmem:[#allocation3 + $0x30] sm:$0xff]
    %v91 = vld [vmem:[#allocation3 + $0x38] sm:$0xff]
    %v92 = vld [vmem:[#allocation3 + $0x40] sm:$0xff]
    %v93 = vld [vmem:[#allocation3 + $0x48] sm:$0xff]
    %v94 = vld [vmem:[#allocation3 + $0x50] sm:$0xff]
    %v95 = vld [vmem:[#allocation3 + $0x58] sm:$0xff]
    %v96 = vld [vmem:[#allocation3 + $0x60] sm:$0xff]
    %v97 = vld [vmem:[#allocation3 + $0x68] sm:$0xff]
    %v98 = vld [vmem:[#allocation3 + $0x70] sm:$0xff]
    %v99 = vld [vmem:[#allocation3 + $0x78] sm:$0xff]
    %v100 = vld [vmem:[%s2] sm:$0xf]
    %v102 = vlaneseq
    %v103 = vshrl.u32 %v102, 7
    %v104 = vsub.s32 0, %v103
    %v105 = vrot.slane %v100, %v104
    %v106 = vlaneseq
    %v107 = vshrl.u32 %v106, 7
    %v108 = vsub.s32 1, %v107
    %v109 = vrot.slane %v100, %v108
    %v110 = vlaneseq
    %v111 = vshrl.u32 %v110, 7
    %v112 = vsub.s32 2, %v111
    %v113 = vrot.slane %v100, %v112
    %v114 = vlaneseq
    %v115 = vshrl.u32 %v114, 7
    %v116 = vsub.s32 3, %v115
    %v117 = vrot.slane %v100, %v116
    %vm122 = vcmask 261120
    %v124 = vsel %vm122, %v68, 0
    %v127 = vsel %vm122, %v69, 0
    %v130 = vsel %vm122, %v70, 0
    %v133 = vsel %vm122, %v71, 0
    %v136 = vsel %vm122, %v72, 0
    %v139 = vsel %vm122, %v73, 0
    %v142 = vsel %vm122, %v74, 0
    %v145 = vsel %vm122, %v75, 0
    %v148 = vsel %vm122, %v76, 0
    %v151 = vsel %vm122, %v77, 0
    %v154 = vsel %vm122, %v78, 0
    %v157 = vsel %vm122, %v79, 0
    %v160 = vsel %vm122, %v80, 0
    %v163 = vsel %vm122, %v81, 0
    %v166 = vsel %vm122, %v82, 0
    %v169 = vsel %vm122, %v83, 0
    %171 = vmatprep.subr.mxu0 0.0
    %172 = vmatpush1.msra.mxu0 0.0
    %173 = vmatprep.subr.mxu0 0.0
    %174 = vmatpush1.msra.mxu0 0.0
    %175 = vmatprep.subr.mxu0 0.0
    %176 = vmatpush1.msra.mxu0 0.0
    %177 = vmatprep.subr.mxu0 0.0
    %178 = vmatpush1.msra.mxu0 0.0
    %179 = vmatprep.subr.mxu0 0.0
    %180 = vmatpush1.msra.mxu0 0.0
    %181 = vmatprep.subr.mxu0 0.0
    %182 = vmatpush1.msra.mxu0 0.0
    %183 = vmatprep.subr.mxu0 0.0
    %184 = vmatpush1.msra.mxu0 0.0
    %185 = vmatprep.subr.mxu0 0.0
    %186 = vmatpush1.msra.mxu0 0.0
    %187 = vmatprep.subr.mxu0 0.0
    %188 = vmatpush1.msra.mxu0 0.0
    %189 = vmatprep.subr.mxu0 0.0
    %190 = vmatpush1.msra.mxu0 0.0
    %191 = vmatprep.subr.mxu0 0.0
    %192 = vmatpush1.msra.mxu0 0.0
    %193 = vmatprep.subr.mxu0 0.0
    %194 = vmatpush1.msra.mxu0 0.0
    %195 = vmatprep.subr.mxu0 %v97
    %196 = vmatpush1.msra.mxu0 %v96
    %197 = vmatprep.subr.mxu0 %v93
    %198 = vmatpush1.msra.mxu0 %v92
    %199 = vmatprep.subr.mxu0 %v89
    %200 = vmatpush1.msra.mxu0 %v88
    %201 = vmatprep.subr.mxu0 %v85
    %202 = vmatpush1.msra.mxu0 %v84
    %203 = vmatprep.subr.mxu0 0.0
    %204 = vmatpush2.msra.mxu0 0.0
    %205 = vmatprep.subr.mxu0 0.0
    %206 = vmatpush2.msra.mxu0 0.0
    %207 = vmatprep.subr.mxu0 0.0
    %208 = vmatpush2.msra.mxu0 0.0
    %209 = vmatprep.subr.mxu0 0.0
    %210 = vmatpush2.msra.mxu0 0.0
    %211 = vmatprep.subr.mxu0 0.0
    %212 = vmatpush2.msra.mxu0 0.0
    %213 = vmatprep.subr.mxu0 0.0
    %214 = vmatpush2.msra.mxu0 0.0
    %215 = vmatprep.subr.mxu0 0.0
    %216 = vmatpush2.msra.mxu0 0.0
    %217 = vmatprep.subr.mxu0 0.0
    %218 = vmatpush2.msra.mxu0 0.0
    %219 = vmatprep.subr.mxu0 0.0
    %220 = vmatpush2.msra.mxu0 0.0
    %221 = vmatprep.subr.mxu0 0.0
    %222 = vmatpush2.msra.mxu0 0.0
    %223 = vmatprep.subr.mxu0 0.0
    %224 = vmatpush2.msra.mxu0 0.0
    %225 = vmatprep.subr.mxu0 0.0
    %226 = vmatpush2.msra.mxu0 0.0
    %227 = vmatprep.subr.mxu0 0.0
    %228 = vmatpush2.msra.mxu0 0.0
    %229 = vmatprep.subr.mxu0 0.0
    %230 = vmatpush2.msra.mxu0 0.0
    %231 = vmatprep.subr.mxu0 0.0
    %232 = vmatpush2.msra.mxu0 0.0
    %233 = vmatprep.subr.mxu0 0.0
    %234 = vmatpush2.msra.mxu0 0.0
    %235 = vmatprep.mubr.f32.mxu0 0.0
    %236 = vmatmul.mubr.f32.gmra.mxu0 %v124
    %v237 = vpop.f32.mrf.mxu0
    %v238 = vadd.f32 %v105, %v237
    %v239 = vpop.f32.mrf.mxu0
    %v240 = vadd.f32 %v109, %v239
    %241 = vmatprep.mubr.f32.mxu0 0.0
    %242 = vmatmul.mubr.f32.gmra.mxu0 %v127
    %v243 = vpop.f32.mrf.mxu0
    %v244 = vadd.f32 %v105, %v243
    %v245 = vpop.f32.mrf.mxu0
    %v246 = vadd.f32 %v109, %v245
    %247 = vmatprep.mubr.f32.mxu0 0.0
    %248 = vmatmul.mubr.f32.gmra.mxu0 %v130
    %v249 = vpop.f32.mrf.mxu0
    %v250 = vadd.f32 %v105, %v249
    %v251 = vpop.f32.mrf.mxu0
    %v252 = vadd.f32 %v109, %v251
    %253 = vmatprep.mubr.f32.mxu0 0.0
    %254 = vmatmul.mubr.f32.gmra.mxu0 %v133
    %v255 = vpop.f32.mrf.mxu0
    %v256 = vadd.f32 %v105, %v255
    %v257 = vpop.f32.mrf.mxu0
    %v258 = vadd.f32 %v109, %v257
    %259 = vmatprep.mubr.f32.mxu0 0.0
    %260 = vmatmul.mubr.f32.gmra.mxu0 %v136
    %v261 = vpop.f32.mrf.mxu0
    %v262 = vadd.f32 %v105, %v261
    %v263 = vpop.f32.mrf.mxu0
    %v264 = vadd.f32 %v109, %v263
    %265 = vmatprep.mubr.f32.mxu0 0.0
    %266 = vmatmul.mubr.f32.gmra.mxu0 %v139
    %v267 = vpop.f32.mrf.mxu0
    %v268 = vadd.f32 %v105, %v267
    %v269 = vpop.f32.mrf.mxu0
    %v270 = vadd.f32 %v109, %v269
    %271 = vmatprep.mubr.f32.mxu0 0.0
    %272 = vmatmul.mubr.f32.gmra.mxu0 %v142
    %v273 = vpop.f32.mrf.mxu0
    %v274 = vadd.f32 %v105, %v273
    %v275 = vpop.f32.mrf.mxu0
    %v276 = vadd.f32 %v109, %v275
    %277 = vmatprep.mubr.f32.mxu0 0.0
    %278 = vmatmul.mubr.f32.gmra.mxu0 %v145
    %v279 = vpop.f32.mrf.mxu0
    %v280 = vadd.f32 %v105, %v279
    %v281 = vpop.f32.mrf.mxu0
    %v282 = vadd.f32 %v109, %v281
    %283 = vmatprep.mubr.f32.mxu0 0.0
    %284 = vmatmul.mubr.f32.gmra.mxu0 %v148
    %v285 = vpop.f32.mrf.mxu0
    %v286 = vadd.f32 %v105, %v285
    %v287 = vpop.f32.mrf.mxu0
    %v288 = vadd.f32 %v109, %v287
    %289 = vmatprep.mubr.f32.mxu0 0.0
    %290 = vmatmul.mubr.f32.gmra.mxu0 %v151
    %v291 = vpop.f32.mrf.mxu0
    %v292 = vadd.f32 %v105, %v291
    %v293 = vpop.f32.mrf.mxu0
    %v294 = vadd.f32 %v109, %v293
    %295 = vmatprep.mubr.f32.mxu0 0.0
    %296 = vmatmul.mubr.f32.gmra.mxu0 %v154
    %v297 = vpop.f32.mrf.mxu0
    %v298 = vadd.f32 %v105, %v297
    %v299 = vpop.f32.mrf.mxu0
    %v300 = vadd.f32 %v109, %v299
    %301 = vmatprep.mubr.f32.mxu0 0.0
    %302 = vmatmul.mubr.f32.gmra.mxu0 %v157
    %v303 = vpop.f32.mrf.mxu0
    %v304 = vadd.f32 %v105, %v303
    %v305 = vpop.f32.mrf.mxu0
    %v306 = vadd.f32 %v109, %v305
    %307 = vmatprep.mubr.f32.mxu0 0.0
    %308 = vmatmul.mubr.f32.gmra.mxu0 %v160
    %v309 = vpop.f32.mrf.mxu0
    %v310 = vadd.f32 %v105, %v309
    %v311 = vpop.f32.mrf.mxu0
    %v312 = vadd.f32 %v109, %v311
    %313 = vmatprep.mubr.f32.mxu0 0.0
    %314 = vmatmul.mubr.f32.gmra.mxu0 %v163
    %v315 = vpop.f32.mrf.mxu0
    %v316 = vadd.f32 %v105, %v315
    %v317 = vpop.f32.mrf.mxu0
    %v318 = vadd.f32 %v109, %v317
    %319 = vmatprep.mubr.f32.mxu0 0.0
    %320 = vmatmul.mubr.f32.gmra.mxu0 %v166
    %v321 = vpop.f32.mrf.mxu0
    %v322 = vadd.f32 %v105, %v321
    %v323 = vpop.f32.mrf.mxu0
    %v324 = vadd.f32 %v109, %v323
    %325 = vmatprep.mubr.f32.mxu0 0.0
    %326 = vmatmul.mubr.f32.gmra.mxu0 %v169
    %v327 = vpop.f32.mrf.mxu0
    %v328 = vadd.f32 %v105, %v327
    %v329 = vpop.f32.mrf.mxu0
    %v330 = vadd.f32 %v109, %v329
    %331 = vdwg.mxu0
    %332 = vmatprep.subr.mxu0 0.0
    %333 = vmatpush1.msra.mxu0 0.0
    %334 = vmatprep.subr.mxu0 0.0
    %335 = vmatpush1.msra.mxu0 0.0
    %336 = vmatprep.subr.mxu0 0.0
    %337 = vmatpush1.msra.mxu0 0.0
    %338 = vmatprep.subr.mxu0 0.0
    %339 = vmatpush1.msra.mxu0 0.0
    %340 = vmatprep.subr.mxu0 0.0
    %341 = vmatpush1.msra.mxu0 0.0
    %342 = vmatprep.subr.mxu0 0.0
    %343 = vmatpush1.msra.mxu0 0.0
    %344 = vmatprep.subr.mxu0 0.0
    %345 = vmatpush1.msra.mxu0 0.0
    %346 = vmatprep.subr.mxu0 0.0
    %347 = vmatpush1.msra.mxu0 0.0
    %348 = vmatprep.subr.mxu0 0.0
    %349 = vmatpush1.msra.mxu0 0.0
    %350 = vmatprep.subr.mxu0 0.0
    %351 = vmatpush1.msra.mxu0 0.0
    %352 = vmatprep.subr.mxu0 0.0
    %353 = vmatpush1.msra.mxu0 0.0
    %354 = vmatprep.subr.mxu0 0.0
    %355 = vmatpush1.msra.mxu0 0.0
    %356 = vmatprep.subr.mxu0 %v99
    %357 = vmatpush1.msra.mxu0 %v98
    %358 = vmatprep.subr.mxu0 %v95
    %359 = vmatpush1.msra.mxu0 %v94
    %360 = vmatprep.subr.mxu0 %v91
    %361 = vmatpush1.msra.mxu0 %v90
    %362 = vmatprep.subr.mxu0 %v87
    %363 = vmatpush1.msra.mxu0 %v86
    %364 = vmatprep.subr.mxu0 0.0
    %365 = vmatpush2.msra.mxu0 0.0
    %366 = vmatprep.subr.mxu0 0.0
    %367 = vmatpush2.msra.mxu0 0.0
    %368 = vmatprep.subr.mxu0 0.0
    %369 = vmatpush2.msra.mxu0 0.0
    %370 = vmatprep.subr.mxu0 0.0
    %371 = vmatpush2.msra.mxu0 0.0
    %372 = vmatprep.subr.mxu0 0.0
    %373 = vmatpush2.msra.mxu0 0.0
    %374 = vmatprep.subr.mxu0 0.0
    %375 = vmatpush2.msra.mxu0 0.0
    %376 = vmatprep.subr.mxu0 0.0
    %377 = vmatpush2.msra.mxu0 0.0
    %378 = vmatprep.subr.mxu0 0.0
    %379 = vmatpush2.msra.mxu0 0.0
    %380 = vmatprep.subr.mxu0 0.0
    %381 = vmatpush2.msra.mxu0 0.0
    %382 = vmatprep.subr.mxu0 0.0
    %383 = vmatpush2.msra.mxu0 0.0
    %384 = vmatprep.subr.mxu0 0.0
    %385 = vmatpush2.msra.mxu0 0.0
    %386 = vmatprep.subr.mxu0 0.0
    %387 = vmatpush2.msra.mxu0 0.0
    %388 = vmatprep.subr.mxu0 0.0
    %389 = vmatpush2.msra.mxu0 0.0
    %390 = vmatprep.subr.mxu0 0.0
    %391 = vmatpush2.msra.mxu0 0.0
    %392 = vmatprep.subr.mxu0 0.0
    %393 = vmatpush2.msra.mxu0 0.0
    %394 = vmatprep.subr.mxu0 0.0
    %395 = vmatpush2.msra.mxu0 0.0
    %396 = vmatprep.mubr.f32.mxu0 0.0
    %397 = vmatmul.mubr.f32.gmra.mxu0 %v124
    %v398 = vpop.f32.mrf.mxu0
    %v399 = vadd.f32 %v113, %v398
    %v400 = vpop.f32.mrf.mxu0
    %v401 = vadd.f32 %v117, %v400
    %402 = vmatprep.mubr.f32.mxu0 0.0
    %403 = vmatmul.mubr.f32.gmra.mxu0 %v127
    %v404 = vpop.f32.mrf.mxu0
    %v405 = vadd.f32 %v113, %v404
    %v406 = vpop.f32.mrf.mxu0
    %v407 = vadd.f32 %v117, %v406
    %408 = vmatprep.mubr.f32.mxu0 0.0
    %409 = vmatmul.mubr.f32.gmra.mxu0 %v130
    %v410 = vpop.f32.mrf.mxu0
    %v411 = vadd.f32 %v113, %v410
    %v412 = vpop.f32.mrf.mxu0
    %v413 = vadd.f32 %v117, %v412
    %414 = vmatprep.mubr.f32.mxu0 0.0
    %415 = vmatmul.mubr.f32.gmra.mxu0 %v133
    %v416 = vpop.f32.mrf.mxu0
    %v417 = vadd.f32 %v113, %v416
    %v418 = vpop.f32.mrf.mxu0
    %v419 = vadd.f32 %v117, %v418
    %420 = vmatprep.mubr.f32.mxu0 0.0
    %421 = vmatmul.mubr.f32.gmra.mxu0 %v136
    %v422 = vpop.f32.mrf.mxu0
    %v423 = vadd.f32 %v113, %v422
    %v424 = vpop.f32.mrf.mxu0
    %v425 = vadd.f32 %v117, %v424
    %426 = vmatprep.mubr.f32.mxu0 0.0
    %427 = vmatmul.mubr.f32.gmra.mxu0 %v139
    %v428 = vpop.f32.mrf.mxu0
    %v429 = vadd.f32 %v113, %v428
    %v430 = vpop.f32.mrf.mxu0
    %v431 = vadd.f32 %v117, %v430
    %432 = vmatprep.mubr.f32.mxu0 0.0
    %433 = vmatmul.mubr.f32.gmra.mxu0 %v142
    %v434 = vpop.f32.mrf.mxu0
    %v435 = vadd.f32 %v113, %v434
    %v436 = vpop.f32.mrf.mxu0
    %v437 = vadd.f32 %v117, %v436
    %438 = vmatprep.mubr.f32.mxu0 0.0
    %439 = vmatmul.mubr.f32.gmra.mxu0 %v145
    %v440 = vpop.f32.mrf.mxu0
    %v441 = vadd.f32 %v113, %v440
    %v442 = vpop.f32.mrf.mxu0
    %v443 = vadd.f32 %v117, %v442
    %444 = vmatprep.mubr.f32.mxu0 0.0
    %445 = vmatmul.mubr.f32.gmra.mxu0 %v148
    %v446 = vpop.f32.mrf.mxu0
    %v447 = vadd.f32 %v113, %v446
    %v448 = vpop.f32.mrf.mxu0
    %v449 = vadd.f32 %v117, %v448
    %450 = vmatprep.mubr.f32.mxu0 0.0
    %451 = vmatmul.mubr.f32.gmra.mxu0 %v151
    %v452 = vpop.f32.mrf.mxu0
    %v453 = vadd.f32 %v113, %v452
    %v454 = vpop.f32.mrf.mxu0
    %v455 = vadd.f32 %v117, %v454
    %456 = vmatprep.mubr.f32.mxu0 0.0
    %457 = vmatmul.mubr.f32.gmra.mxu0 %v154
    %v458 = vpop.f32.mrf.mxu0
    %v459 = vadd.f32 %v113, %v458
    %v460 = vpop.f32.mrf.mxu0
    %v461 = vadd.f32 %v117, %v460
    %462 = vmatprep.mubr.f32.mxu0 0.0
    %463 = vmatmul.mubr.f32.gmra.mxu0 %v157
    %v464 = vpop.f32.mrf.mxu0
    %v465 = vadd.f32 %v113, %v464
    %v466 = vpop.f32.mrf.mxu0
    %v467 = vadd.f32 %v117, %v466
    %468 = vmatprep.mubr.f32.mxu0 0.0
    %469 = vmatmul.mubr.f32.gmra.mxu0 %v160
    %v470 = vpop.f32.mrf.mxu0
    %v471 = vadd.f32 %v113, %v470
    %v472 = vpop.f32.mrf.mxu0
    %v473 = vadd.f32 %v117, %v472
    %474 = vmatprep.mubr.f32.mxu0 0.0
    %475 = vmatmul.mubr.f32.gmra.mxu0 %v163
    %v476 = vpop.f32.mrf.mxu0
    %v477 = vadd.f32 %v113, %v476
    %v478 = vpop.f32.mrf.mxu0
    %v479 = vadd.f32 %v117, %v478
    %480 = vmatprep.mubr.f32.mxu0 0.0
    %481 = vmatmul.mubr.f32.gmra.mxu0 %v166
    %v482 = vpop.f32.mrf.mxu0
    %v483 = vadd.f32 %v113, %v482
    %v484 = vpop.f32.mrf.mxu0
    %v485 = vadd.f32 %v117, %v484
    %486 = vmatprep.mubr.f32.mxu0 0.0
    %487 = vmatmul.mubr.f32.gmra.mxu0 %v169
    %v488 = vpop.f32.mrf.mxu0
    %v489 = vadd.f32 %v113, %v488
    %v490 = vpop.f32.mrf.mxu0
    %v491 = vadd.f32 %v117, %v490
    %492 = vdwg.mxu0
    %v493 = vmax.f32 %v238, 0.0
    %v494 = vmax.f32 %v240, 0.0
    %v495 = vmax.f32 %v399, 0.0
    %v496 = vmax.f32 %v401, 0.0
    %v497 = vmax.f32 %v244, 0.0
    %v498 = vmax.f32 %v246, 0.0
    %v499 = vmax.f32 %v405, 0.0
    %v500 = vmax.f32 %v407, 0.0
    %v501 = vmax.f32 %v250, 0.0
    %v502 = vmax.f32 %v252, 0.0
    %v503 = vmax.f32 %v411, 0.0
    %v504 = vmax.f32 %v413, 0.0
    %v505 = vmax.f32 %v256, 0.0
    %v506 = vmax.f32 %v258, 0.0
    %v507 = vmax.f32 %v417, 0.0
    %v508 = vmax.f32 %v419, 0.0
    %v509 = vmax.f32 %v262, 0.0
    %v510 = vmax.f32 %v264, 0.0
    %v511 = vmax.f32 %v423, 0.0
    %v512 = vmax.f32 %v425, 0.0
    %v513 = vmax.f32 %v268, 0.0
    %v514 = vmax.f32 %v270, 0.0
    %v515 = vmax.f32 %v429, 0.0
    %v516 = vmax.f32 %v431, 0.0
    %v517 = vmax.f32 %v274, 0.0
    %v518 = vmax.f32 %v276, 0.0
    %v519 = vmax.f32 %v435, 0.0
    %v520 = vmax.f32 %v437, 0.0
    %v521 = vmax.f32 %v280, 0.0
    %v522 = vmax.f32 %v282, 0.0
    %v523 = vmax.f32 %v441, 0.0
    %v524 = vmax.f32 %v443, 0.0
    %v525 = vmax.f32 %v286, 0.0
    %v526 = vmax.f32 %v288, 0.0
    %v527 = vmax.f32 %v447, 0.0
    %v528 = vmax.f32 %v449, 0.0
    %v529 = vmax.f32 %v292, 0.0
    %v530 = vmax.f32 %v294, 0.0
    %v531 = vmax.f32 %v453, 0.0
    %v532 = vmax.f32 %v455, 0.0
    %v533 = vmax.f32 %v298, 0.0
    %v534 = vmax.f32 %v300, 0.0
    %v535 = vmax.f32 %v459, 0.0
    %v536 = vmax.f32 %v461, 0.0
    %v537 = vmax.f32 %v304, 0.0
    %v538 = vmax.f32 %v306, 0.0
    %v539 = vmax.f32 %v465, 0.0
    %v540 = vmax.f32 %v467, 0.0
    %v541 = vmax.f32 %v310, 0.0
    %v542 = vmax.f32 %v312, 0.0
    %v543 = vmax.f32 %v471, 0.0
    %v544 = vmax.f32 %v473, 0.0
    %v545 = vmax.f32 %v316, 0.0
    %v546 = vmax.f32 %v318, 0.0
    %v547 = vmax.f32 %v477, 0.0
    %v548 = vmax.f32 %v479, 0.0
    %v549 = vmax.f32 %v322, 0.0
    %v550 = vmax.f32 %v324, 0.0
    %v551 = vmax.f32 %v483, 0.0
    %v552 = vmax.f32 %v485, 0.0
    %v553 = vmax.f32 %v328, 0.0
    %v554 = vmax.f32 %v330, 0.0
    %v555 = vmax.f32 %v489, 0.0
    %v556 = vmax.f32 %v491, 0.0
    %v557 = vld [vmem:[#allocation6] sm:$0xff]
    %v558 = vld [vmem:[#allocation6 + $0x8] sm:$0xff]
    %v559 = vld [vmem:[#allocation6 + $0x10] sm:$0xff]
    %v560 = vld [vmem:[#allocation6 + $0x18] sm:$0xff]
    %v561 = vld [vmem:[#allocation6 + $0x20] sm:$0xff]
    %v562 = vld [vmem:[#allocation6 + $0x28] sm:$0xff]
    %v563 = vld [vmem:[#allocation6 + $0x30] sm:$0xff]
    %v564 = vld [vmem:[#allocation6 + $0x38] sm:$0xff]
    %v565 = vld [vmem:[#allocation6 + $0x40] sm:$0xff]
    %v566 = vld [vmem:[#allocation6 + $0x48] sm:$0xff]
    %v567 = vld [vmem:[#allocation6 + $0x50] sm:$0xff]
    %v568 = vld [vmem:[#allocation6 + $0x58] sm:$0xff]
    %v569 = vld [vmem:[#allocation6 + $0x60] sm:$0xff]
    %v570 = vld [vmem:[#allocation6 + $0x68] sm:$0xff]
    %v571 = vld [vmem:[#allocation6 + $0x70] sm:$0xff]
    %v572 = vld [vmem:[#allocation6 + $0x78] sm:$0xff]
    %v573 = vld [vmem:[#allocation6 + $0x80] sm:$0xff]
    %v574 = vld [vmem:[#allocation6 + $0x88] sm:$0xff]
    %v575 = vld [vmem:[#allocation6 + $0x90] sm:$0xff]
    %v576 = vld [vmem:[#allocation6 + $0x98] sm:$0xff]
    %v577 = vld [vmem:[#allocation6 + $0xa0] sm:$0xff]
    %v578 = vld [vmem:[#allocation6 + $0xa8] sm:$0xff]
    %v579 = vld [vmem:[#allocation6 + $0xb0] sm:$0xff]
    %v580 = vld [vmem:[#allocation6 + $0xb8] sm:$0xff]
    %v581 = vld [vmem:[#allocation6 + $0xc0] sm:$0xff]
    %v582 = vld [vmem:[#allocation6 + $0xc8] sm:$0xff]
    %v583 = vld [vmem:[#allocation6 + $0xd0] sm:$0xff]
    %v584 = vld [vmem:[#allocation6 + $0xd8] sm:$0xff]
    %v585 = vld [vmem:[#allocation6 + $0xe0] sm:$0xff]
    %v586 = vld [vmem:[#allocation6 + $0xe8] sm:$0xff]
    %v587 = vld [vmem:[#allocation6 + $0xf0] sm:$0xff]
    %v588 = vld [vmem:[#allocation6 + $0xf8] sm:$0xff]
    %v589 = vld [vmem:[#allocation6 + $0x100] sm:$0xff]
    %v590 = vld [vmem:[#allocation6 + $0x108] sm:$0xff]
    %v591 = vld [vmem:[#allocation6 + $0x110] sm:$0xff]
    %v592 = vld [vmem:[#allocation6 + $0x118] sm:$0xff]
    %v593 = vld [vmem:[#allocation6 + $0x120] sm:$0xff]
    %v594 = vld [vmem:[#allocation6 + $0x128] sm:$0xff]
    %v595 = vld [vmem:[#allocation6 + $0x130] sm:$0xff]
    %v596 = vld [vmem:[#allocation6 + $0x138] sm:$0xff]
    %v597 = vld [vmem:[#allocation6 + $0x140] sm:$0xff]
    %v598 = vld [vmem:[#allocation6 + $0x148] sm:$0xff]
    %v599 = vld [vmem:[#allocation6 + $0x150] sm:$0xff]
    %v600 = vld [vmem:[#allocation6 + $0x158] sm:$0xff]
    %v601 = vld [vmem:[#allocation6 + $0x160] sm:$0xff]
    %v602 = vld [vmem:[#allocation6 + $0x168] sm:$0xff]
    %v603 = vld [vmem:[#allocation6 + $0x170] sm:$0xff]
    %v604 = vld [vmem:[#allocation6 + $0x178] sm:$0xff]
    %v605 = vld [vmem:[#allocation6 + $0x180] sm:$0xff]
    %v606 = vld [vmem:[#allocation6 + $0x188] sm:$0xff]
    %v607 = vld [vmem:[#allocation6 + $0x190] sm:$0xff]
    %v608 = vld [vmem:[#allocation6 + $0x198] sm:$0xff]
    %v609 = vld [vmem:[#allocation6 + $0x1a0] sm:$0xff]
    %v610 = vld [vmem:[#allocation6 + $0x1a8] sm:$0xff]
    %v611 = vld [vmem:[#allocation6 + $0x1b0] sm:$0xff]
    %v612 = vld [vmem:[#allocation6 + $0x1b8] sm:$0xff]
    %v613 = vld [vmem:[#allocation6 + $0x1c0] sm:$0xff]
    %v614 = vld [vmem:[#allocation6 + $0x1c8] sm:$0xff]
    %v615 = vld [vmem:[#allocation6 + $0x1d0] sm:$0xff]
    %v616 = vld [vmem:[#allocation6 + $0x1d8] sm:$0xff]
    %v617 = vld [vmem:[#allocation6 + $0x1e0] sm:$0xff]
    %v618 = vld [vmem:[#allocation6 + $0x1e8] sm:$0xff]
    %v619 = vld [vmem:[#allocation6 + $0x1f0] sm:$0xff]
    %v620 = vld [vmem:[#allocation6 + $0x1f8] sm:$0xff]
    %v621 = vld [vmem:[#allocation6 + $0x200] sm:$0xff]
    %v622 = vld [vmem:[#allocation6 + $0x208] sm:$0xff]
    %v623 = vld [vmem:[#allocation6 + $0x210] sm:$0xff]
    %v624 = vld [vmem:[#allocation6 + $0x218] sm:$0xff]
    %v625 = vld [vmem:[#allocation6 + $0x220] sm:$0xff]
    %v626 = vld [vmem:[#allocation6 + $0x228] sm:$0xff]
    %v627 = vld [vmem:[#allocation6 + $0x230] sm:$0xff]
    %v628 = vld [vmem:[#allocation6 + $0x238] sm:$0xff]
    %v629 = vld [vmem:[#allocation6 + $0x240] sm:$0xff]
    %v630 = vld [vmem:[#allocation6 + $0x248] sm:$0xff]
    %v631 = vld [vmem:[#allocation6 + $0x250] sm:$0xff]
    %v632 = vld [vmem:[#allocation6 + $0x258] sm:$0xff]
    %v633 = vld [vmem:[#allocation6 + $0x260] sm:$0xff]
    %v634 = vld [vmem:[#allocation6 + $0x268] sm:$0xff]
    %v635 = vld [vmem:[#allocation6 + $0x270] sm:$0xff]
    %v636 = vld [vmem:[#allocation6 + $0x278] sm:$0xff]
    %v637 = vld [vmem:[#allocation6 + $0x280] sm:$0xff]
    %v638 = vld [vmem:[#allocation6 + $0x288] sm:$0xff]
    %v639 = vld [vmem:[#allocation6 + $0x290] sm:$0xff]
    %v640 = vld [vmem:[#allocation6 + $0x298] sm:$0xff]
    %v641 = vld [vmem:[#allocation6 + $0x2a0] sm:$0xff]
    %v642 = vld [vmem:[#allocation6 + $0x2a8] sm:$0xff]
    %v643 = vld [vmem:[#allocation6 + $0x2b0] sm:$0xff]
    %v644 = vld [vmem:[#allocation6 + $0x2b8] sm:$0xff]
    %v645 = vld [vmem:[#allocation6 + $0x2c0] sm:$0xff]
    %v646 = vld [vmem:[#allocation6 + $0x2c8] sm:$0xff]
    %v647 = vld [vmem:[#allocation6 + $0x2d0] sm:$0xff]
    %v648 = vld [vmem:[#allocation6 + $0x2d8] sm:$0xff]
    %v649 = vld [vmem:[#allocation6 + $0x2e0] sm:$0xff]
    %v650 = vld [vmem:[#allocation6 + $0x2e8] sm:$0xff]
    %v651 = vld [vmem:[#allocation6 + $0x2f0] sm:$0xff]
    %v652 = vld [vmem:[#allocation6 + $0x2f8] sm:$0xff]
    %v653 = vld [vmem:[#allocation6 + $0x300] sm:$0xff]
    %v654 = vld [vmem:[#allocation6 + $0x308] sm:$0xff]
    %v655 = vld [vmem:[#allocation6 + $0x310] sm:$0xff]
    %v656 = vld [vmem:[#allocation6 + $0x318] sm:$0xff]
    %v657 = vld [vmem:[#allocation6 + $0x320] sm:$0xff]
    %v658 = vld [vmem:[#allocation6 + $0x328] sm:$0xff]
    %v659 = vld [vmem:[#allocation6 + $0x330] sm:$0xff]
    %v660 = vld [vmem:[#allocation6 + $0x338] sm:$0xff]
    %v661 = vld [vmem:[#allocation6 + $0x340] sm:$0xff]
    %v662 = vld [vmem:[#allocation6 + $0x348] sm:$0xff]
    %v663 = vld [vmem:[#allocation6 + $0x350] sm:$0xff]
    %v664 = vld [vmem:[#allocation6 + $0x358] sm:$0xff]
    %v665 = vld [vmem:[#allocation6 + $0x360] sm:$0xff]
    %v666 = vld [vmem:[#allocation6 + $0x368] sm:$0xff]
    %v667 = vld [vmem:[#allocation6 + $0x370] sm:$0xff]
    %v668 = vld [vmem:[#allocation6 + $0x378] sm:$0xff]
    %v669 = vld [vmem:[#allocation6 + $0x380] sm:$0xff]
    %v670 = vld [vmem:[#allocation6 + $0x388] sm:$0xff]
    %v671 = vld [vmem:[#allocation6 + $0x390] sm:$0xff]
    %v672 = vld [vmem:[#allocation6 + $0x398] sm:$0xff]
    %v673 = vld [vmem:[#allocation6 + $0x3a0] sm:$0xff]
    %v674 = vld [vmem:[#allocation6 + $0x3a8] sm:$0xff]
    %v675 = vld [vmem:[#allocation6 + $0x3b0] sm:$0xff]
    %v676 = vld [vmem:[#allocation6 + $0x3b8] sm:$0xff]
    %v677 = vld [vmem:[#allocation6 + $0x3c0] sm:$0xff]
    %v678 = vld [vmem:[#allocation6 + $0x3c8] sm:$0xff]
    %v679 = vld [vmem:[#allocation6 + $0x3d0] sm:$0xff]
    %v680 = vld [vmem:[#allocation6 + $0x3d8] sm:$0xff]
    %v681 = vld [vmem:[#allocation6 + $0x3e0] sm:$0xff]
    %v682 = vld [vmem:[#allocation6 + $0x3e8] sm:$0xff]
    %v683 = vld [vmem:[#allocation6 + $0x3f0] sm:$0xff]
    %v684 = vld [vmem:[#allocation6 + $0x3f8] sm:$0xff]
    %v685 = vld [vmem:[%s4] sm:$0x3]
    %v687 = vlaneseq
    %v688 = vshrl.u32 %v687, 7
    %v689 = vsub.s32 0, %v688
    %v690 = vrot.slane %v685, %v689
    %v691 = vlaneseq
    %v692 = vshrl.u32 %v691, 7
    %v693 = vsub.s32 1, %v692
    %v694 = vrot.slane %v685, %v693
    %697 = vmatprep.subr.mxu0 %v588
    %698 = vmatpush1.msra.mxu0 %v587
    %699 = vmatprep.subr.mxu0 %v586
    %700 = vmatpush1.msra.mxu0 %v585
    %701 = vmatprep.subr.mxu0 %v584
    %702 = vmatpush1.msra.mxu0 %v583
    %703 = vmatprep.subr.mxu0 %v582
    %704 = vmatpush1.msra.mxu0 %v581
    %705 = vmatprep.subr.mxu0 %v580
    %706 = vmatpush1.msra.mxu0 %v579
    %707 = vmatprep.subr.mxu0 %v578
    %708 = vmatpush1.msra.mxu0 %v577
    %709 = vmatprep.subr.mxu0 %v576
    %710 = vmatpush1.msra.mxu0 %v575
    %711 = vmatprep.subr.mxu0 %v574
    %712 = vmatpush1.msra.mxu0 %v573
    %713 = vmatprep.subr.mxu0 %v572
    %714 = vmatpush1.msra.mxu0 %v571
    %715 = vmatprep.subr.mxu0 %v570
    %716 = vmatpush1.msra.mxu0 %v569
    %717 = vmatprep.subr.mxu0 %v568
    %718 = vmatpush1.msra.mxu0 %v567
    %719 = vmatprep.subr.mxu0 %v566
    %720 = vmatpush1.msra.mxu0 %v565
    %721 = vmatprep.subr.mxu0 %v564
    %722 = vmatpush1.msra.mxu0 %v563
    %723 = vmatprep.subr.mxu0 %v562
    %724 = vmatpush1.msra.mxu0 %v561
    %725 = vmatprep.subr.mxu0 %v560
    %726 = vmatpush1.msra.mxu0 %v559
    %727 = vmatprep.subr.mxu0 %v558
    %728 = vmatpush1.msra.mxu0 %v557
    %729 = vmatprep.subr.mxu0 %v620
    %730 = vmatpush2.msra.mxu0 %v619
    %731 = vmatprep.subr.mxu0 %v618
    %732 = vmatpush2.msra.mxu0 %v617
    %733 = vmatprep.subr.mxu0 %v616
    %734 = vmatpush2.msra.mxu0 %v615
    %735 = vmatprep.subr.mxu0 %v614
    %736 = vmatpush2.msra.mxu0 %v613
    %737 = vmatprep.subr.mxu0 %v612
    %738 = vmatpush2.msra.mxu0 %v611
    %739 = vmatprep.subr.mxu0 %v610
    %740 = vmatpush2.msra.mxu0 %v609
    %741 = vmatprep.subr.mxu0 %v608
    %742 = vmatpush2.msra.mxu0 %v607
    %743 = vmatprep.subr.mxu0 %v606
    %744 = vmatpush2.msra.mxu0 %v605
    %745 = vmatprep.subr.mxu0 %v604
    %746 = vmatpush2.msra.mxu0 %v603
    %747 = vmatprep.subr.mxu0 %v602
    %748 = vmatpush2.msra.mxu0 %v601
    %749 = vmatprep.subr.mxu0 %v600
    %750 = vmatpush2.msra.mxu0 %v599
    %751 = vmatprep.subr.mxu0 %v598
    %752 = vmatpush2.msra.mxu0 %v597
    %753 = vmatprep.subr.mxu0 %v596
    %754 = vmatpush2.msra.mxu0 %v595
    %755 = vmatprep.subr.mxu0 %v594
    %756 = vmatpush2.msra.mxu0 %v593
    %757 = vmatprep.subr.mxu0 %v592
    %758 = vmatpush2.msra.mxu0 %v591
    %759 = vmatprep.subr.mxu0 %v590
    %760 = vmatpush2.msra.mxu0 %v589
    %761 = vmatprep.mubr.f32.mxu0 %v494
    %762 = vmatmul.mubr.f32.gmra.mxu0 %v493
    %v763 = vpop.f32.mrf.mxu0
    %v764 = vadd.f32 %v690, %v763
    %v765 = vpop.f32.mrf.mxu0
    %v766 = vadd.f32 %v694, %v765
    %767 = vmatprep.mubr.f32.mxu0 %v498
    %768 = vmatmul.mubr.f32.gmra.mxu0 %v497
    %v769 = vpop.f32.mrf.mxu0
    %v770 = vadd.f32 %v690, %v769
    %v771 = vpop.f32.mrf.mxu0
    %v772 = vadd.f32 %v694, %v771
    %773 = vmatprep.mubr.f32.mxu0 %v502
    %774 = vmatmul.mubr.f32.gmra.mxu0 %v501
    %v775 = vpop.f32.mrf.mxu0
    %v776 = vadd.f32 %v690, %v775
    %v777 = vpop.f32.mrf.mxu0
    %v778 = vadd.f32 %v694, %v777
    %779 = vmatprep.mubr.f32.mxu0 %v506
    %780 = vmatmul.mubr.f32.gmra.mxu0 %v505
    %v781 = vpop.f32.mrf.mxu0
    %v782 = vadd.f32 %v690, %v781
    %v783 = vpop.f32.mrf.mxu0
    %v784 = vadd.f32 %v694, %v783
    %785 = vmatprep.mubr.f32.mxu0 %v510
    %786 = vmatmul.mubr.f32.gmra.mxu0 %v509
    %v787 = vpop.f32.mrf.mxu0
    %v788 = vadd.f32 %v690, %v787
    %v789 = vpop.f32.mrf.mxu0
    %v790 = vadd.f32 %v694, %v789
    %791 = vmatprep.mubr.f32.mxu0 %v514
    %792 = vmatmul.mubr.f32.gmra.mxu0 %v513
    %v793 = vpop.f32.mrf.mxu0
    %v794 = vadd.f32 %v690, %v793
    %v795 = vpop.f32.mrf.mxu0
    %v796 = vadd.f32 %v694, %v795
    %797 = vmatprep.mubr.f32.mxu0 %v518
    %798 = vmatmul.mubr.f32.gmra.mxu0 %v517
    %v799 = vpop.f32.mrf.mxu0
    %v800 = vadd.f32 %v690, %v799
    %v801 = vpop.f32.mrf.mxu0
    %v802 = vadd.f32 %v694, %v801
    %803 = vmatprep.mubr.f32.mxu0 %v522
    %804 = vmatmul.mubr.f32.gmra.mxu0 %v521
    %v805 = vpop.f32.mrf.mxu0
    %v806 = vadd.f32 %v690, %v805
    %v807 = vpop.f32.mrf.mxu0
    %v808 = vadd.f32 %v694, %v807
    %809 = vmatprep.mubr.f32.mxu0 %v526
    %810 = vmatmul.mubr.f32.gmra.mxu0 %v525
    %v811 = vpop.f32.mrf.mxu0
    %v812 = vadd.f32 %v690, %v811
    %v813 = vpop.f32.mrf.mxu0
    %v814 = vadd.f32 %v694, %v813
    %815 = vmatprep.mubr.f32.mxu0 %v530
    %816 = vmatmul.mubr.f32.gmra.mxu0 %v529
    %v817 = vpop.f32.mrf.mxu0
    %v818 = vadd.f32 %v690, %v817
    %v819 = vpop.f32.mrf.mxu0
    %v820 = vadd.f32 %v694, %v819
    %821 = vmatprep.mubr.f32.mxu0 %v534
    %822 = vmatmul.mubr.f32.gmra.mxu0 %v533
    %v823 = vpop.f32.mrf.mxu0
    %v824 = vadd.f32 %v690, %v823
    %v825 = vpop.f32.mrf.mxu0
    %v826 = vadd.f32 %v694, %v825
    %827 = vmatprep.mubr.f32.mxu0 %v538
    %828 = vmatmul.mubr.f32.gmra.mxu0 %v537
    %v829 = vpop.f32.mrf.mxu0
    %v830 = vadd.f32 %v690, %v829
    %v831 = vpop.f32.mrf.mxu0
    %v832 = vadd.f32 %v694, %v831
    %833 = vmatprep.mubr.f32.mxu0 %v542
    %834 = vmatmul.mubr.f32.gmra.mxu0 %v541
    %v835 = vpop.f32.mrf.mxu0
    %v836 = vadd.f32 %v690, %v835
    %v837 = vpop.f32.mrf.mxu0
    %v838 = vadd.f32 %v694, %v837
    %839 = vmatprep.mubr.f32.mxu0 %v546
    %840 = vmatmul.mubr.f32.gmra.mxu0 %v545
    %v841 = vpop.f32.mrf.mxu0
    %v842 = vadd.f32 %v690, %v841
    %v843 = vpop.f32.mrf.mxu0
    %v844 = vadd.f32 %v694, %v843
    %845 = vmatprep.mubr.f32.mxu0 %v550
    %846 = vmatmul.mubr.f32.gmra.mxu0 %v549
    %v847 = vpop.f32.mrf.mxu0
    %v848 = vadd.f32 %v690, %v847
    %v849 = vpop.f32.mrf.mxu0
    %v850 = vadd.f32 %v694, %v849
    %851 = vmatprep.mubr.f32.mxu0 %v554
    %852 = vmatmul.mubr.f32.gmra.mxu0 %v553
    %v853 = vpop.f32.mrf.mxu0
    %v854 = vadd.f32 %v690, %v853
    %v855 = vpop.f32.mrf.mxu0
    %v856 = vadd.f32 %v694, %v855
    %857 = vdwg.mxu0
    %858 = vmatprep.subr.mxu0 %v652
    %859 = vmatpush1.msra.mxu0 %v651
    %860 = vmatprep.subr.mxu0 %v650
    %861 = vmatpush1.msra.mxu0 %v649
    %862 = vmatprep.subr.mxu0 %v648
    %863 = vmatpush1.msra.mxu0 %v647
    %864 = vmatprep.subr.mxu0 %v646
    %865 = vmatpush1.msra.mxu0 %v645
    %866 = vmatprep.subr.mxu0 %v644
    %867 = vmatpush1.msra.mxu0 %v643
    %868 = vmatprep.subr.mxu0 %v642
    %869 = vmatpush1.msra.mxu0 %v641
    %870 = vmatprep.subr.mxu0 %v640
    %871 = vmatpush1.msra.mxu0 %v639
    %872 = vmatprep.subr.mxu0 %v638
    %873 = vmatpush1.msra.mxu0 %v637
    %874 = vmatprep.subr.mxu0 %v636
    %875 = vmatpush1.msra.mxu0 %v635
    %876 = vmatprep.subr.mxu0 %v634
    %877 = vmatpush1.msra.mxu0 %v633
    %878 = vmatprep.subr.mxu0 %v632
    %879 = vmatpush1.msra.mxu0 %v631
    %880 = vmatprep.subr.mxu0 %v630
    %881 = vmatpush1.msra.mxu0 %v629
    %882 = vmatprep.subr.mxu0 %v628
    %883 = vmatpush1.msra.mxu0 %v627
    %884 = vmatprep.subr.mxu0 %v626
    %885 = vmatpush1.msra.mxu0 %v625
    %886 = vmatprep.subr.mxu0 %v624
    %887 = vmatpush1.msra.mxu0 %v623
    %888 = vmatprep.subr.mxu0 %v622
    %889 = vmatpush1.msra.mxu0 %v621
    %890 = vmatprep.subr.mxu0 %v684
    %891 = vmatpush2.msra.mxu0 %v683
    %892 = vmatprep.subr.mxu0 %v682
    %893 = vmatpush2.msra.mxu0 %v681
    %894 = vmatprep.subr.mxu0 %v680
    %895 = vmatpush2.msra.mxu0 %v679
    %896 = vmatprep.subr.mxu0 %v678
    %897 = vmatpush2.msra.mxu0 %v677
    %898 = vmatprep.subr.mxu0 %v676
    %899 = vmatpush2.msra.mxu0 %v675
    %900 = vmatprep.subr.mxu0 %v674
    %901 = vmatpush2.msra.mxu0 %v673
    %902 = vmatprep.subr.mxu0 %v672
    %903 = vmatpush2.msra.mxu0 %v671
    %904 = vmatprep.subr.mxu0 %v670
    %905 = vmatpush2.msra.mxu0 %v669
    %906 = vmatprep.subr.mxu0 %v668
    %907 = vmatpush2.msra.mxu0 %v667
    %908 = vmatprep.subr.mxu0 %v666
    %909 = vmatpush2.msra.mxu0 %v665
    %910 = vmatprep.subr.mxu0 %v664
    %911 = vmatpush2.msra.mxu0 %v663
    %912 = vmatprep.subr.mxu0 %v662
    %913 = vmatpush2.msra.mxu0 %v661
    %914 = vmatprep.subr.mxu0 %v660
    %915 = vmatpush2.msra.mxu0 %v659
    %916 = vmatprep.subr.mxu0 %v658
    %917 = vmatpush2.msra.mxu0 %v657
    %918 = vmatprep.subr.mxu0 %v656
    %919 = vmatpush2.msra.mxu0 %v655
    %920 = vmatprep.subr.mxu0 %v654
    %921 = vmatpush2.msra.mxu0 %v653
    %922 = vmatprep.mubr.f32.mxu0 %v496
    %923 = vmatmul.mubr.f32.gmra.mxu0 %v495
    %v924 = vpop.f32.mrf.mxu0
    %v925 = vadd.f32 %v764, %v924
    %v926 = vpop.f32.mrf.mxu0
    %v927 = vadd.f32 %v766, %v926
    %928 = vmatprep.mubr.f32.mxu0 %v500
    %929 = vmatmul.mubr.f32.gmra.mxu0 %v499
    %v930 = vpop.f32.mrf.mxu0
    %v931 = vadd.f32 %v770, %v930
    %v932 = vpop.f32.mrf.mxu0
    %v933 = vadd.f32 %v772, %v932
    %934 = vmatprep.mubr.f32.mxu0 %v504
    %935 = vmatmul.mubr.f32.gmra.mxu0 %v503
    %v936 = vpop.f32.mrf.mxu0
    %v937 = vadd.f32 %v776, %v936
    %v938 = vpop.f32.mrf.mxu0
    %v939 = vadd.f32 %v778, %v938
    %940 = vmatprep.mubr.f32.mxu0 %v508
    %941 = vmatmul.mubr.f32.gmra.mxu0 %v507
    %v942 = vpop.f32.mrf.mxu0
    %v943 = vadd.f32 %v782, %v942
    %v944 = vpop.f32.mrf.mxu0
    %v945 = vadd.f32 %v784, %v944
    %946 = vmatprep.mubr.f32.mxu0 %v512
    %947 = vmatmul.mubr.f32.gmra.mxu0 %v511
    %v948 = vpop.f32.mrf.mxu0
    %v949 = vadd.f32 %v788, %v948
    %v950 = vpop.f32.mrf.mxu0
    %v951 = vadd.f32 %v790, %v950
    %952 = vmatprep.mubr.f32.mxu0 %v516
    %953 = vmatmul.mubr.f32.gmra.mxu0 %v515
    %v954 = vpop.f32.mrf.mxu0
    %v955 = vadd.f32 %v794, %v954
    %v956 = vpop.f32.mrf.mxu0
    %v957 = vadd.f32 %v796, %v956
    %958 = vmatprep.mubr.f32.mxu0 %v520
    %959 = vmatmul.mubr.f32.gmra.mxu0 %v519
    %v960 = vpop.f32.mrf.mxu0
    %v961 = vadd.f32 %v800, %v960
    %v962 = vpop.f32.mrf.mxu0
    %v963 = vadd.f32 %v802, %v962
    %964 = vmatprep.mubr.f32.mxu0 %v524
    %965 = vmatmul.mubr.f32.gmra.mxu0 %v523
    %v966 = vpop.f32.mrf.mxu0
    %v967 = vadd.f32 %v806, %v966
    %v968 = vpop.f32.mrf.mxu0
    %v969 = vadd.f32 %v808, %v968
    %970 = vmatprep.mubr.f32.mxu0 %v528
    %971 = vmatmul.mubr.f32.gmra.mxu0 %v527
    %v972 = vpop.f32.mrf.mxu0
    %v973 = vadd.f32 %v812, %v972
    %v974 = vpop.f32.mrf.mxu0
    %v975 = vadd.f32 %v814, %v974
    %976 = vmatprep.mubr.f32.mxu0 %v532
    %977 = vmatmul.mubr.f32.gmra.mxu0 %v531
    %v978 = vpop.f32.mrf.mxu0
    %v979 = vadd.f32 %v818, %v978
    %v980 = vpop.f32.mrf.mxu0
    %v981 = vadd.f32 %v820, %v980
    %982 = vmatprep.mubr.f32.mxu0 %v536
    %983 = vmatmul.mubr.f32.gmra.mxu0 %v535
    %v984 = vpop.f32.mrf.mxu0
    %v985 = vadd.f32 %v824, %v984
    %v986 = vpop.f32.mrf.mxu0
    %v987 = vadd.f32 %v826, %v986
    %988 = vmatprep.mubr.f32.mxu0 %v540
    %989 = vmatmul.mubr.f32.gmra.mxu0 %v539
    %v990 = vpop.f32.mrf.mxu0
    %v991 = vadd.f32 %v830, %v990
    %v992 = vpop.f32.mrf.mxu0
    %v993 = vadd.f32 %v832, %v992
    %994 = vmatprep.mubr.f32.mxu0 %v544
    %995 = vmatmul.mubr.f32.gmra.mxu0 %v543
    %v996 = vpop.f32.mrf.mxu0
    %v997 = vadd.f32 %v836, %v996
    %v998 = vpop.f32.mrf.mxu0
    %v999 = vadd.f32 %v838, %v998
    %1000 = vmatprep.mubr.f32.mxu0 %v548
    %1001 = vmatmul.mubr.f32.gmra.mxu0 %v547
    %v1002 = vpop.f32.mrf.mxu0
    %v1003 = vadd.f32 %v842, %v1002
    %v1004 = vpop.f32.mrf.mxu0
    %v1005 = vadd.f32 %v844, %v1004
    %1006 = vmatprep.mubr.f32.mxu0 %v552
    %1007 = vmatmul.mubr.f32.gmra.mxu0 %v551
    %v1008 = vpop.f32.mrf.mxu0
    %v1009 = vadd.f32 %v848, %v1008
    %v1010 = vpop.f32.mrf.mxu0
    %v1011 = vadd.f32 %v850, %v1010
    %1012 = vmatprep.mubr.f32.mxu0 %v556
    %1013 = vmatmul.mubr.f32.gmra.mxu0 %v555
    %v1014 = vpop.f32.mrf.mxu0
    %v1015 = vadd.f32 %v854, %v1014
    %v1016 = vpop.f32.mrf.mxu0
    %v1017 = vadd.f32 %v856, %v1016
    %1018 = vdwg.mxu0
    %v1019 = vmax.f32 %v925, 0.0
    %v1020 = vmax.f32 %v927, 0.0
    %v1021 = vmax.f32 %v931, 0.0
    %v1022 = vmax.f32 %v933, 0.0
    %v1023 = vmax.f32 %v937, 0.0
    %v1024 = vmax.f32 %v939, 0.0
    %v1025 = vmax.f32 %v943, 0.0
    %v1026 = vmax.f32 %v945, 0.0
    %v1027 = vmax.f32 %v949, 0.0
    %v1028 = vmax.f32 %v951, 0.0
    %v1029 = vmax.f32 %v955, 0.0
    %v1030 = vmax.f32 %v957, 0.0
    %v1031 = vmax.f32 %v961, 0.0
    %v1032 = vmax.f32 %v963, 0.0
    %v1033 = vmax.f32 %v967, 0.0
    %v1034 = vmax.f32 %v969, 0.0
    %v1035 = vmax.f32 %v973, 0.0
    %v1036 = vmax.f32 %v975, 0.0
    %v1037 = vmax.f32 %v979, 0.0
    %v1038 = vmax.f32 %v981, 0.0
    %v1039 = vmax.f32 %v985, 0.0
    %v1040 = vmax.f32 %v987, 0.0
    %v1041 = vmax.f32 %v991, 0.0
    %v1042 = vmax.f32 %v993, 0.0
    %v1043 = vmax.f32 %v997, 0.0
    %v1044 = vmax.f32 %v999, 0.0
    %v1045 = vmax.f32 %v1003, 0.0
    %v1046 = vmax.f32 %v1005, 0.0
    %v1047 = vmax.f32 %v1009, 0.0
    %v1048 = vmax.f32 %v1011, 0.0
    %v1049 = vmax.f32 %v1015, 0.0
    %v1050 = vmax.f32 %v1017, 0.0
    %v1051 = vld [vmem:[%s5] sm:$0xff]
    %v1052 = vld [vmem:[%s5 + $0x8] sm:$0xff]
    %v1053 = vld [vmem:[%s5 + $0x10] sm:$0xff]
    %v1054 = vld [vmem:[%s5 + $0x18] sm:$0xff]
    %v1055 = vld [vmem:[%s5 + $0x20] sm:$0xff]
    %v1056 = vld [vmem:[%s5 + $0x28] sm:$0xff]
    %v1057 = vld [vmem:[%s5 + $0x30] sm:$0xff]
    %v1058 = vld [vmem:[%s5 + $0x38] sm:$0xff]
    %v1059 = vld [vmem:[%s5 + $0x40] sm:$0xff]
    %v1060 = vld [vmem:[%s5 + $0x48] sm:$0xff]
    %v1061 = vld [vmem:[%s5 + $0x50] sm:$0xff]
    %v1062 = vld [vmem:[%s5 + $0x58] sm:$0xff]
    %v1063 = vld [vmem:[%s5 + $0x60] sm:$0xff]
    %v1064 = vld [vmem:[%s5 + $0x68] sm:$0xff]
    %v1065 = vld [vmem:[%s5 + $0x70] sm:$0xff]
    %v1066 = vld [vmem:[%s5 + $0x78] sm:$0xff]
    %v1067 = vld [vmem:[%s5 + $0x80] sm:$0xff]
    %v1068 = vld [vmem:[%s5 + $0x88] sm:$0xff]
    %v1069 = vld [vmem:[%s5 + $0x90] sm:$0xff]
    %v1070 = vld [vmem:[%s5 + $0x98] sm:$0xff]
    %v1071 = vld [vmem:[%s5 + $0xa0] sm:$0xff]
    %v1072 = vld [vmem:[%s5 + $0xa8] sm:$0xff]
    %v1073 = vld [vmem:[%s5 + $0xb0] sm:$0xff]
    %v1074 = vld [vmem:[%s5 + $0xb8] sm:$0xff]
    %v1075 = vld [vmem:[%s5 + $0xc0] sm:$0xff]
    %v1076 = vld [vmem:[%s5 + $0xc8] sm:$0xff]
    %v1077 = vld [vmem:[%s5 + $0xd0] sm:$0xff]
    %v1078 = vld [vmem:[%s5 + $0xd8] sm:$0xff]
    %v1079 = vld [vmem:[%s5 + $0xe0] sm:$0xff]
    %v1080 = vld [vmem:[%s5 + $0xe8] sm:$0xff]
    %v1081 = vld [vmem:[%s5 + $0xf0] sm:$0xff]
    %v1082 = vld [vmem:[%s5 + $0xf8] sm:$0xff]
    %v1083 = vld [vmem:[%s6] sm:$0x1]
    %v1085 = vlaneseq
    %v1086 = vshrl.u32 %v1085, 7
    %v1087 = vsub.s32 0, %v1086
    %v1088 = vrot.slane %v1083, %v1087
    %1090 = vmatprep.subr.mxu0 0.0
    %1091 = vmatpush1.msra.mxu0 %v1066
    %1092 = vmatprep.subr.mxu0 0.0
    %1093 = vmatpush1.msra.mxu0 %v1065
    %1094 = vmatprep.subr.mxu0 0.0
    %1095 = vmatpush1.msra.mxu0 %v1064
    %1096 = vmatprep.subr.mxu0 0.0
    %1097 = vmatpush1.msra.mxu0 %v1063
    %1098 = vmatprep.subr.mxu0 0.0
    %1099 = vmatpush1.msra.mxu0 %v1062
    %1100 = vmatprep.subr.mxu0 0.0
    %1101 = vmatpush1.msra.mxu0 %v1061
    %1102 = vmatprep.subr.mxu0 0.0
    %1103 = vmatpush1.msra.mxu0 %v1060
    %1104 = vmatprep.subr.mxu0 0.0
    %1105 = vmatpush1.msra.mxu0 %v1059
    %1106 = vmatprep.subr.mxu0 0.0
    %1107 = vmatpush1.msra.mxu0 %v1058
    %1108 = vmatprep.subr.mxu0 0.0
    %1109 = vmatpush1.msra.mxu0 %v1057
    %1110 = vmatprep.subr.mxu0 0.0
    %1111 = vmatpush1.msra.mxu0 %v1056
    %1112 = vmatprep.subr.mxu0 0.0
    %1113 = vmatpush1.msra.mxu0 %v1055
    %1114 = vmatprep.subr.mxu0 0.0
    %1115 = vmatpush1.msra.mxu0 %v1054
    %1116 = vmatprep.subr.mxu0 0.0
    %1117 = vmatpush1.msra.mxu0 %v1053
    %1118 = vmatprep.subr.mxu0 0.0
    %1119 = vmatpush1.msra.mxu0 %v1052
    %1120 = vmatprep.subr.mxu0 0.0
    %1121 = vmatpush1.msra.mxu0 %v1051
    %1122 = vmatprep.subr.mxu0 0.0
    %1123 = vmatpush2.msra.mxu0 %v1082
    %1124 = vmatprep.subr.mxu0 0.0
    %1125 = vmatpush2.msra.mxu0 %v1081
    %1126 = vmatprep.subr.mxu0 0.0
    %1127 = vmatpush2.msra.mxu0 %v1080
    %1128 = vmatprep.subr.mxu0 0.0
    %1129 = vmatpush2.msra.mxu0 %v1079
    %1130 = vmatprep.subr.mxu0 0.0
    %1131 = vmatpush2.msra.mxu0 %v1078
    %1132 = vmatprep.subr.mxu0 0.0
    %1133 = vmatpush2.msra.mxu0 %v1077
    %1134 = vmatprep.subr.mxu0 0.0
    %1135 = vmatpush2.msra.mxu0 %v1076
    %1136 = vmatprep.subr.mxu0 0.0
    %1137 = vmatpush2.msra.mxu0 %v1075
    %1138 = vmatprep.subr.mxu0 0.0
    %1139 = vmatpush2.msra.mxu0 %v1074
    %1140 = vmatprep.subr.mxu0 0.0
    %1141 = vmatpush2.msra.mxu0 %v1073
    %1142 = vmatprep.subr.mxu0 0.0
    %1143 = vmatpush2.msra.mxu0 %v1072
    %1144 = vmatprep.subr.mxu0 0.0
    %1145 = vmatpush2.msra.mxu0 %v1071
    %1146 = vmatprep.subr.mxu0 0.0
    %1147 = vmatpush2.msra.mxu0 %v1070
    %1148 = vmatprep.subr.mxu0 0.0
    %1149 = vmatpush2.msra.mxu0 %v1069
    %1150 = vmatprep.subr.mxu0 0.0
    %1151 = vmatpush2.msra.mxu0 %v1068
    %1152 = vmatprep.subr.mxu0 0.0
    %1153 = vmatpush2.msra.mxu0 %v1067
    %1154 = vmatprep.mubr.f32.mxu0 %v1020
    %1155 = vmatmul.mubr.f32.gmra.mxu0 %v1019
    %v1156 = vpop.f32.mrf.mxu0
    %v1157 = vadd.f32 %v1088, %v1156
    %v1158 = vpop.f32.mrf.mxu0
    %1159 = vmatprep.mubr.f32.mxu0 %v1022
    %1160 = vmatmul.mubr.f32.gmra.mxu0 %v1021
    %v1161 = vpop.f32.mrf.mxu0
    %v1162 = vadd.f32 %v1088, %v1161
    %v1163 = vpop.f32.mrf.mxu0
    %1164 = vmatprep.mubr.f32.mxu0 %v1024
    %1165 = vmatmul.mubr.f32.gmra.mxu0 %v1023
    %v1166 = vpop.f32.mrf.mxu0
    %v1167 = vadd.f32 %v1088, %v1166
    %v1168 = vpop.f32.mrf.mxu0
    %1169 = vmatprep.mubr.f32.mxu0 %v1026
    %1170 = vmatmul.mubr.f32.gmra.mxu0 %v1025
    %v1171 = vpop.f32.mrf.mxu0
    %v1172 = vadd.f32 %v1088, %v1171
    %v1173 = vpop.f32.mrf.mxu0
    %1174 = vmatprep.mubr.f32.mxu0 %v1028
    %1175 = vmatmul.mubr.f32.gmra.mxu0 %v1027
    %v1176 = vpop.f32.mrf.mxu0
    %v1177 = vadd.f32 %v1088, %v1176
    %v1178 = vpop.f32.mrf.mxu0
    %1179 = vmatprep.mubr.f32.mxu0 %v1030
    %1180 = vmatmul.mubr.f32.gmra.mxu0 %v1029
    %v1181 = vpop.f32.mrf.mxu0
    %v1182 = vadd.f32 %v1088, %v1181
    %v1183 = vpop.f32.mrf.mxu0
    %1184 = vmatprep.mubr.f32.mxu0 %v1032
    %1185 = vmatmul.mubr.f32.gmra.mxu0 %v1031
    %v1186 = vpop.f32.mrf.mxu0
    %v1187 = vadd.f32 %v1088, %v1186
    %v1188 = vpop.f32.mrf.mxu0
    %1189 = vmatprep.mubr.f32.mxu0 %v1034
    %1190 = vmatmul.mubr.f32.gmra.mxu0 %v1033
    %v1191 = vpop.f32.mrf.mxu0
    %v1192 = vadd.f32 %v1088, %v1191
    %v1193 = vpop.f32.mrf.mxu0
    %1194 = vmatprep.mubr.f32.mxu0 %v1036
    %1195 = vmatmul.mubr.f32.gmra.mxu0 %v1035
    %v1196 = vpop.f32.mrf.mxu0
    %v1197 = vadd.f32 %v1088, %v1196
    %v1198 = vpop.f32.mrf.mxu0
    %1199 = vmatprep.mubr.f32.mxu0 %v1038
    %1200 = vmatmul.mubr.f32.gmra.mxu0 %v1037
    %v1201 = vpop.f32.mrf.mxu0
    %v1202 = vadd.f32 %v1088, %v1201
    %v1203 = vpop.f32.mrf.mxu0
    %1204 = vmatprep.mubr.f32.mxu0 %v1040
    %1205 = vmatmul.mubr.f32.gmra.mxu0 %v1039
    %v1206 = vpop.f32.mrf.mxu0
    %v1207 = vadd.f32 %v1088, %v1206
    %v1208 = vpop.f32.mrf.mxu0
    %1209 = vmatprep.mubr.f32.mxu0 %v1042
    %1210 = vmatmul.mubr.f32.gmra.mxu0 %v1041
    %v1211 = vpop.f32.mrf.mxu0
    %v1212 = vadd.f32 %v1088, %v1211
    %v1213 = vpop.f32.mrf.mxu0
    %1214 = vmatprep.mubr.f32.mxu0 %v1044
    %1215 = vmatmul.mubr.f32.gmra.mxu0 %v1043
    %v1216 = vpop.f32.mrf.mxu0
    %v1217 = vadd.f32 %v1088, %v1216
    %v1218 = vpop.f32.mrf.mxu0
    %1219 = vmatprep.mubr.f32.mxu0 %v1046
    %1220 = vmatmul.mubr.f32.gmra.mxu0 %v1045
    %v1221 = vpop.f32.mrf.mxu0
    %v1222 = vadd.f32 %v1088, %v1221
    %v1223 = vpop.f32.mrf.mxu0
    %1224 = vmatprep.mubr.f32.mxu0 %v1048
    %1225 = vmatmul.mubr.f32.gmra.mxu0 %v1047
    %v1226 = vpop.f32.mrf.mxu0
    %v1227 = vadd.f32 %v1088, %v1226
    %v1228 = vpop.f32.mrf.mxu0
    %1229 = vmatprep.mubr.f32.mxu0 %v1050
    %1230 = vmatmul.mubr.f32.gmra.mxu0 %v1049
    %v1231 = vpop.f32.mrf.mxu0
    %v1232 = vadd.f32 %v1088, %v1231
    %v1233 = vpop.f32.mrf.mxu0
    %1234 = vdwg.mxu0
    %v1235 = vmax.f32 %v1157, 0.0
    %v1236 = vmax.f32 %v1162, 0.0
    %v1237 = vmax.f32 %v1167, 0.0
    %v1238 = vmax.f32 %v1172, 0.0
    %v1239 = vmax.f32 %v1177, 0.0
    %v1240 = vmax.f32 %v1182, 0.0
    %v1241 = vmax.f32 %v1187, 0.0
    %v1242 = vmax.f32 %v1192, 0.0
    %v1243 = vmax.f32 %v1197, 0.0
    %v1244 = vmax.f32 %v1202, 0.0
    %v1245 = vmax.f32 %v1207, 0.0
    %v1246 = vmax.f32 %v1212, 0.0
    %v1247 = vmax.f32 %v1217, 0.0
    %v1248 = vmax.f32 %v1222, 0.0
    %v1249 = vmax.f32 %v1227, 0.0
    %v1250 = vmax.f32 %v1232, 0.0
    %v1251 = vld [vmem:[%s7] sm:$0xff]
    %v1252 = vld [vmem:[%s7 + $0x8] sm:$0xff]
    %v1253 = vld [vmem:[%s7 + $0x10] sm:$0xff]
    %v1254 = vld [vmem:[%s7 + $0x18] sm:$0xff]
    %v1255 = vld [vmem:[%s7 + $0x20] sm:$0xff]
    %v1256 = vld [vmem:[%s7 + $0x28] sm:$0xff]
    %v1257 = vld [vmem:[%s7 + $0x30] sm:$0xff]
    %v1258 = vld [vmem:[%s7 + $0x38] sm:$0xff]
    %v1259 = vld [vmem:[%s7 + $0x40] sm:$0xff]
    %v1260 = vld [vmem:[%s7 + $0x48] sm:$0xff]
    %v1261 = vld [vmem:[%s7 + $0x50] sm:$0xff]
    %v1262 = vld [vmem:[%s7 + $0x58] sm:$0xff]
    %v1263 = vld [vmem:[%s7 + $0x60] sm:$0xff]
    %v1264 = vld [vmem:[%s7 + $0x68] sm:$0xff]
    %v1265 = vld [vmem:[%s7 + $0x70] sm:$0xff]
    %v1266 = vld [vmem:[%s7 + $0x78] sm:$0xff]
    %v1267 = vld [vmem:[%s8] sm:$0x1]
    %v1269 = vlaneseq
    %v1270 = vshrl.u32 %v1269, 7
    %v1271 = vsub.s32 0, %v1270
    %v1272 = vrot.slane %v1267, %v1271
    %1274 = vmatprep.subr.mxu0 0.0
    %1275 = vmatpush1.msra.mxu0 %v1266
    %1276 = vmatprep.subr.mxu0 0.0
    %1277 = vmatpush1.msra.mxu0 %v1265
    %1278 = vmatprep.subr.mxu0 0.0
    %1279 = vmatpush1.msra.mxu0 %v1264
    %1280 = vmatprep.subr.mxu0 0.0
    %1281 = vmatpush1.msra.mxu0 %v1263
    %1282 = vmatprep.subr.mxu0 0.0
    %1283 = vmatpush1.msra.mxu0 %v1262
    %1284 = vmatprep.subr.mxu0 0.0
    %1285 = vmatpush1.msra.mxu0 %v1261
    %1286 = vmatprep.subr.mxu0 0.0
    %1287 = vmatpush1.msra.mxu0 %v1260
    %1288 = vmatprep.subr.mxu0 0.0
    %1289 = vmatpush1.msra.mxu0 %v1259
    %1290 = vmatprep.subr.mxu0 0.0
    %1291 = vmatpush1.msra.mxu0 %v1258
    %1292 = vmatprep.subr.mxu0 0.0
    %1293 = vmatpush1.msra.mxu0 %v1257
    %1294 = vmatprep.subr.mxu0 0.0
    %1295 = vmatpush1.msra.mxu0 %v1256
    %1296 = vmatprep.subr.mxu0 0.0
    %1297 = vmatpush1.msra.mxu0 %v1255
    %1298 = vmatprep.subr.mxu0 0.0
    %1299 = vmatpush1.msra.mxu0 %v1254
    %1300 = vmatprep.subr.mxu0 0.0
    %1301 = vmatpush1.msra.mxu0 %v1253
    %1302 = vmatprep.subr.mxu0 0.0
    %1303 = vmatpush1.msra.mxu0 %v1252
    %1304 = vmatprep.subr.mxu0 0.0
    %1305 = vmatpush1.msra.mxu0 %v1251
    %1306 = vmatprep.subr.mxu0 0.0
    %1307 = vmatpush2.msra.mxu0 0.0
    %1308 = vmatprep.subr.mxu0 0.0
    %1309 = vmatpush2.msra.mxu0 0.0
    %1310 = vmatprep.subr.mxu0 0.0
    %1311 = vmatpush2.msra.mxu0 0.0
    %1312 = vmatprep.subr.mxu0 0.0
    %1313 = vmatpush2.msra.mxu0 0.0
    %1314 = vmatprep.subr.mxu0 0.0
    %1315 = vmatpush2.msra.mxu0 0.0
    %1316 = vmatprep.subr.mxu0 0.0
    %1317 = vmatpush2.msra.mxu0 0.0
    %1318 = vmatprep.subr.mxu0 0.0
    %1319 = vmatpush2.msra.mxu0 0.0
    %1320 = vmatprep.subr.mxu0 0.0
    %1321 = vmatpush2.msra.mxu0 0.0
    %1322 = vmatprep.subr.mxu0 0.0
    %1323 = vmatpush2.msra.mxu0 0.0
    %1324 = vmatprep.subr.mxu0 0.0
    %1325 = vmatpush2.msra.mxu0 0.0
    %1326 = vmatprep.subr.mxu0 0.0
    %1327 = vmatpush2.msra.mxu0 0.0
    %1328 = vmatprep.subr.mxu0 0.0
    %1329 = vmatpush2.msra.mxu0 0.0
    %1330 = vmatprep.subr.mxu0 0.0
    %1331 = vmatpush2.msra.mxu0 0.0
    %1332 = vmatprep.subr.mxu0 0.0
    %1333 = vmatpush2.msra.mxu0 0.0
    %1334 = vmatprep.subr.mxu0 0.0
    %1335 = vmatpush2.msra.mxu0 0.0
    %1336 = vmatprep.subr.mxu0 0.0
    %1337 = vmatpush2.msra.mxu0 0.0
    %1338 = vmatprep.mubr.f32.mxu0 0.0
    %1339 = vmatmul.mubr.f32.gmra.mxu0 %v1235
    %v1340 = vpop.f32.mrf.mxu0
    %v1341 = vadd.f32 %v1272, %v1340
    %v1342 = vpop.f32.mrf.mxu0
    %1343 = vmatprep.mubr.f32.mxu0 0.0
    %1344 = vmatmul.mubr.f32.gmra.mxu0 %v1236
    %v1345 = vpop.f32.mrf.mxu0
    %v1346 = vadd.f32 %v1272, %v1345
    %v1347 = vpop.f32.mrf.mxu0
    %1348 = vmatprep.mubr.f32.mxu0 0.0
    %1349 = vmatmul.mubr.f32.gmra.mxu0 %v1237
    %v1350 = vpop.f32.mrf.mxu0
    %v1351 = vadd.f32 %v1272, %v1350
    %v1352 = vpop.f32.mrf.mxu0
    %1353 = vmatprep.mubr.f32.mxu0 0.0
    %1354 = vmatmul.mubr.f32.gmra.mxu0 %v1238
    %v1355 = vpop.f32.mrf.mxu0
    %v1356 = vadd.f32 %v1272, %v1355
    %v1357 = vpop.f32.mrf.mxu0
    %1358 = vmatprep.mubr.f32.mxu0 0.0
    %1359 = vmatmul.mubr.f32.gmra.mxu0 %v1239
    %v1360 = vpop.f32.mrf.mxu0
    %v1361 = vadd.f32 %v1272, %v1360
    %v1362 = vpop.f32.mrf.mxu0
    %1363 = vmatprep.mubr.f32.mxu0 0.0
    %1364 = vmatmul.mubr.f32.gmra.mxu0 %v1240
    %v1365 = vpop.f32.mrf.mxu0
    %v1366 = vadd.f32 %v1272, %v1365
    %v1367 = vpop.f32.mrf.mxu0
    %1368 = vmatprep.mubr.f32.mxu0 0.0
    %1369 = vmatmul.mubr.f32.gmra.mxu0 %v1241
    %v1370 = vpop.f32.mrf.mxu0
    %v1371 = vadd.f32 %v1272, %v1370
    %v1372 = vpop.f32.mrf.mxu0
    %1373 = vmatprep.mubr.f32.mxu0 0.0
    %1374 = vmatmul.mubr.f32.gmra.mxu0 %v1242
    %v1375 = vpop.f32.mrf.mxu0
    %v1376 = vadd.f32 %v1272, %v1375
    %v1377 = vpop.f32.mrf.mxu0
    %1378 = vmatprep.mubr.f32.mxu0 0.0
    %1379 = vmatmul.mubr.f32.gmra.mxu0 %v1243
    %v1380 = vpop.f32.mrf.mxu0
    %v1381 = vadd.f32 %v1272, %v1380
    %v1382 = vpop.f32.mrf.mxu0
    %1383 = vmatprep.mubr.f32.mxu0 0.0
    %1384 = vmatmul.mubr.f32.gmra.mxu0 %v1244
    %v1385 = vpop.f32.mrf.mxu0
    %v1386 = vadd.f32 %v1272, %v1385
    %v1387 = vpop.f32.mrf.mxu0
    %1388 = vmatprep.mubr.f32.mxu0 0.0
    %1389 = vmatmul.mubr.f32.gmra.mxu0 %v1245
    %v1390 = vpop.f32.mrf.mxu0
    %v1391 = vadd.f32 %v1272, %v1390
    %v1392 = vpop.f32.mrf.mxu0
    %1393 = vmatprep.mubr.f32.mxu0 0.0
    %1394 = vmatmul.mubr.f32.gmra.mxu0 %v1246
    %v1395 = vpop.f32.mrf.mxu0
    %v1396 = vadd.f32 %v1272, %v1395
    %v1397 = vpop.f32.mrf.mxu0
    %1398 = vmatprep.mubr.f32.mxu0 0.0
    %1399 = vmatmul.mubr.f32.gmra.mxu0 %v1247
    %v1400 = vpop.f32.mrf.mxu0
    %v1401 = vadd.f32 %v1272, %v1400
    %v1402 = vpop.f32.mrf.mxu0
    %1403 = vmatprep.mubr.f32.mxu0 0.0
    %1404 = vmatmul.mubr.f32.gmra.mxu0 %v1248
    %v1405 = vpop.f32.mrf.mxu0
    %v1406 = vadd.f32 %v1272, %v1405
    %v1407 = vpop.f32.mrf.mxu0
    %1408 = vmatprep.mubr.f32.mxu0 0.0
    %1409 = vmatmul.mubr.f32.gmra.mxu0 %v1249
    %v1410 = vpop.f32.mrf.mxu0
    %v1411 = vadd.f32 %v1272, %v1410
    %v1412 = vpop.f32.mrf.mxu0
    %1413 = vmatprep.mubr.f32.mxu0 0.0
    %1414 = vmatmul.mubr.f32.gmra.mxu0 %v1250
    %v1415 = vpop.f32.mrf.mxu0
    %v1416 = vadd.f32 %v1272, %v1415
    %v1417 = vpop.f32.mrf.mxu0
    %1418 = vdwg.mxu0
    %v1419 = vmax.f32 %v1341, 0.0
    %v1420 = vmax.f32 %v1346, 0.0
    %v1421 = vmax.f32 %v1351, 0.0
    %v1422 = vmax.f32 %v1356, 0.0
    %v1423 = vmax.f32 %v1361, 0.0
    %v1424 = vmax.f32 %v1366, 0.0
    %v1425 = vmax.f32 %v1371, 0.0
    %v1426 = vmax.f32 %v1376, 0.0
    %v1427 = vmax.f32 %v1381, 0.0
    %v1428 = vmax.f32 %v1386, 0.0
    %v1429 = vmax.f32 %v1391, 0.0
    %v1430 = vmax.f32 %v1396, 0.0
    %v1431 = vmax.f32 %v1401, 0.0
    %v1432 = vmax.f32 %v1406, 0.0
    %v1433 = vmax.f32 %v1411, 0.0
    %v1434 = vmax.f32 %v1416, 0.0
    %v1435 = vld [vmem:[%s9] sm:$0x1]
    %s1436 = sld [smem:[#allocation2]]
    %v1437 = vstv %s1436
    %vm1438 = vcmask 523264
    %v1440 = vsel %vm1438, %v1435, 0
    %v1443 = vsel %vm1438, %v1419, 0
    %v1446 = vsel %vm1438, %v1420, 0
    %v1449 = vsel %vm1438, %v1421, 0
    %v1452 = vsel %vm1438, %v1422, 0
    %v1455 = vsel %vm1438, %v1423, 0
    %v1458 = vsel %vm1438, %v1424, 0
    %v1461 = vsel %vm1438, %v1425, 0
    %v1464 = vsel %vm1438, %v1426, 0
    %v1467 = vsel %vm1438, %v1427, 0
    %v1470 = vsel %vm1438, %v1428, 0
    %v1473 = vsel %vm1438, %v1429, 0
    %v1476 = vsel %vm1438, %v1430, 0
    %v1479 = vsel %vm1438, %v1431, 0
    %v1482 = vsel %vm1438, %v1432, 0
    %v1485 = vsel %vm1438, %v1433, 0
    %v1488 = vsel %vm1438, %v1434, 0
    %1490 = vmatprep.subr.mxu0 0.0
    %1491 = vmatpush1.xpose.msra.mxu0 %v1488
    %1492 = vmatprep.subr.mxu0 0.0
    %1493 = vmatpush1.xpose.msra.mxu0 %v1485
    %1494 = vmatprep.subr.mxu0 0.0
    %1495 = vmatpush1.xpose.msra.mxu0 %v1482
    %1496 = vmatprep.subr.mxu0 0.0
    %1497 = vmatpush1.xpose.msra.mxu0 %v1479
    %1498 = vmatprep.subr.mxu0 0.0
    %1499 = vmatpush1.xpose.msra.mxu0 %v1476
    %1500 = vmatprep.subr.mxu0 0.0
    %1501 = vmatpush1.xpose.msra.mxu0 %v1473
    %1502 = vmatprep.subr.mxu0 0.0
    %1503 = vmatpush1.xpose.msra.mxu0 %v1470
    %1504 = vmatprep.subr.mxu0 0.0
    %1505 = vmatpush1.xpose.msra.mxu0 %v1467
    %1506 = vmatprep.subr.mxu0 0.0
    %1507 = vmatpush1.xpose.msra.mxu0 %v1464
    %1508 = vmatprep.subr.mxu0 0.0
    %1509 = vmatpush1.xpose.msra.mxu0 %v1461
    %1510 = vmatprep.subr.mxu0 0.0
    %1511 = vmatpush1.xpose.msra.mxu0 %v1458
    %1512 = vmatprep.subr.mxu0 0.0
    %1513 = vmatpush1.xpose.msra.mxu0 %v1455
    %1514 = vmatprep.subr.mxu0 0.0
    %1515 = vmatpush1.xpose.msra.mxu0 %v1452
    %1516 = vmatprep.subr.mxu0 0.0
    %1517 = vmatpush1.xpose.msra.mxu0 %v1449
    %1518 = vmatprep.subr.mxu0 0.0
    %1519 = vmatpush1.xpose.msra.mxu0 %v1446
    %1520 = vmatprep.subr.mxu0 0.0
    %1521 = vmatpush1.xpose.msra.mxu0 %v1443
    %1522 = vmatprep.subr.mxu0 0.0
    %1523 = vmatpush2.xpose.msra.mxu0 0.0
    %1524 = vmatprep.subr.mxu0 0.0
    %1525 = vmatpush2.xpose.msra.mxu0 0.0
    %1526 = vmatprep.subr.mxu0 0.0
    %1527 = vmatpush2.xpose.msra.mxu0 0.0
    %1528 = vmatprep.subr.mxu0 0.0
    %1529 = vmatpush2.xpose.msra.mxu0 0.0
    %1530 = vmatprep.subr.mxu0 0.0
    %1531 = vmatpush2.xpose.msra.mxu0 0.0
    %1532 = vmatprep.subr.mxu0 0.0
    %1533 = vmatpush2.xpose.msra.mxu0 0.0
    %1534 = vmatprep.subr.mxu0 0.0
    %1535 = vmatpush2.xpose.msra.mxu0 0.0
    %1536 = vmatprep.subr.mxu0 0.0
    %1537 = vmatpush2.xpose.msra.mxu0 0.0
    %1538 = vmatprep.subr.mxu0 0.0
    %1539 = vmatpush2.xpose.msra.mxu0 0.0
    %1540 = vmatprep.subr.mxu0 0.0
    %1541 = vmatpush2.xpose.msra.mxu0 0.0
    %1542 = vmatprep.subr.mxu0 0.0
    %1543 = vmatpush2.xpose.msra.mxu0 0.0
    %1544 = vmatprep.subr.mxu0 0.0
    %1545 = vmatpush2.xpose.msra.mxu0 0.0
    %1546 = vmatprep.subr.mxu0 0.0
    %1547 = vmatpush2.xpose.msra.mxu0 0.0
    %1548 = vmatprep.subr.mxu0 0.0
    %1549 = vmatpush2.xpose.msra.mxu0 0.0
    %1550 = vmatprep.subr.mxu0 0.0
    %1551 = vmatpush2.xpose.msra.mxu0 0.0
    %1552 = vmatprep.subr.mxu0 0.0
    %1553 = vmatpush2.xpose.msra.mxu0 0.0
    %1554 = vmatprep.mubr.f32.mxu0 0.0
    %1555 = vmatmul.mubr.f32.gmra.mxu0 %v1440
    %v1556 = vpop.f32.mrf.mxu0
    %v1557 = vadd.f32 %v1437, %v1556
    %v1558 = vpop.f32.mrf.mxu0
    %1559 = vdwg.mxu0
    %1560 = vst [vmem:[#allocation8] sm:$0x1] %v1557
    // Predicated region
    $region54: #{tpu_custom_call.1} parent=1 // pred_check
      _
    $region55: #{tpu_custom_call.1} parent=1 // pred_check_branch
      %1562 = sbr.rel (0) target = $region57
    $region56: #{tpu_custom_call.1} parent=1 // pred_region
      %s1564 = ssub.s32 16, 16
      %1565 = vsyncadd [#allocation5], %s1564
      %s1567 = sshll.u32 [#allocation8], 4
      %s1568 = int_to_ptr.vmem [resolvable:$true] %s1567
      %1570 = dma.vmem_to_hbm [thread:$0]  %s1568, 16, %s11, [#allocation5]
    $region57: #{tpu_custom_call.1} parent=1 // pred_fallthru
      _
    // Predicated region
    $region58: #{tpu_custom_call.1} parent=1 // pred_check
      _
    $region59: #{tpu_custom_call.1} parent=1 // pred_check_branch
      %1572 = sbr.rel (0) target = $region61
    $region60: #{tpu_custom_call.1} parent=1 // pred_region
      %1573 = dma.done [#allocation5], 16
    $region61: #{tpu_custom_call.1} parent=1 // pred_fallthru
      _
    %1574 = vsyncpa [#allocation4], 1
    %1575 = vsyncpa [#allocation7], 1
    %1576 = vsyncpa [#allocation5], 1

</llo_original>
